<compile_context>
chip_gen: v7x
topology: tpu7x:2x2x1
jax: 0.10.0
libtpu: 0.0.40
codegen_flags: <defaults>
</compile_context>

<pallas_src>
import jax
import jax.numpy as jnp
from jax.experimental import pallas as pl
from jax.experimental.pallas import tpu as pltpu

HOURS_BEFORE = 24
N = 60
LSTM_IN = N * HOURS_BEFORE  # 1440


# --------------------------- fused forward kernel ----------------------------
def _fused_kernel(x_ref, wih_ref, whh_ref, b_ref,
                  w1, b1, w2, b2, w3, b3, w4, b4, w5, b5,
                  out_ref, feat_ref):
    # x_ref    : (T, 1440 + E)  raw input (lstm part || exogenous part)
    # wih_ref  : (1440, 4H) bf16   input->gates weight (transposed)
    # whh_ref  : (H, 4H)    f32    hidden->gates weight (transposed)
    # b_ref    : (1, 4H)    f32    b_ih + b_hh
    # wN / bN  : MLP weights (bf16) and biases (f32), transposed
    # out_ref  : (T, n_labels)
    # feat_ref : (T, 2H + E) VMEM scratch holding [h_t || h_T || exog]
    H = whh_ref.shape[0]
    T = x_ref.shape[0]
    E = x_ref.shape[1] - LSTM_IN

    # ---- big input projection, done once on the MXU (bf16 in, f32 acc) ----
    x_lstm = x_ref[:, :LSTM_IN].astype(jnp.bfloat16)          # (T, 1440)
    xg = jnp.dot(x_lstm, wih_ref[...],
                 preferred_element_type=jnp.float32) + b_ref[...]   # (T, 4H) f32

    whh = whh_ref[...]                                         # hoisted (H, 4H)

    h = jnp.zeros((1, H), jnp.float32)
    c = jnp.zeros((1, H), jnp.float32)

    # ---- fully unrolled recurrence (T is a compile-time shape) ----
    # TODO(synk): for T in the thousands, switch to a T-tiled grid + fori_loop
    # to bound compile time and VMEM (v7x: 64 MiB physical, 32 MiB scoped).
    for t in range(T):
        g = xg[t:t + 1, :] + jnp.dot(h, whh,
                                     preferred_element_type=jnp.float32)  # (1,4H)
        s = jax.nn.sigmoid(g)          # one full-vreg EUP pass (i, f, o gates)
        th = jnp.tanh(g)               # one full-vreg EUP pass (g gate)
        # PyTorch gate order: i, f, g, o
        i_g = s[:, 0:H]
        f_g = s[:, H:2 * H]
        g_g = th[:, 2 * H:3 * H]
        o_g = s[:, 3 * H:4 * H]
        c = f_g * c + i_g * g_g
        h = o_g * jnp.tanh(c)
        feat_ref[pl.ds(t, 1), pl.ds(0, H)] = h                 # out_seq column

    # Replicate final hidden state over all T rows and append exogenous feats.
    feat_ref[pl.ds(0, T), pl.ds(H, H)] = jnp.broadcast_to(h, (T, H))
    if E > 0:
        feat_ref[pl.ds(0, T), pl.ds(2 * H, E)] = x_ref[:, LSTM_IN:]

    feat = feat_ref[...]                                        # (T, 2H+E) f32

    # ---- 5-layer MLP, bf16 weights, f32 accumulation ----
    def lin(a, w, b):
        return jnp.dot(a.astype(w.dtype), w[...],
                       preferred_element_type=jnp.float32) + b[...]

    y = jnp.maximum(lin(feat, w1, b1), 0.0)
    y = jnp.maximum(lin(y, w2, b2), 0.0)
    y = jnp.maximum(lin(y, w3, b3), 0.0)
    # dropout -> identity (eval mode)
    y = jnp.maximum(lin(y, w4, b4), 0.0)
    y = lin(y, w5, b5)
    out_ref[...] = jax.nn.sigmoid(y)


# -------------------------------- wrapper -------------------------------------
def lstm_hidden_forward(x, params):
    T, input_size = x.shape
    H = params["whh_t"].shape[0]
    E = input_size - LSTM_IN
    n_labels = params["b5"].shape[1]
    feat_dim = 2 * H + E

    vmem = pl.BlockSpec(memory_space=pltpu.MemorySpace.VMEM)

    return pl.pallas_call(
        _fused_kernel,
        out_shape=jax.ShapeDtypeStruct((T, n_labels), jnp.float32),
        in_specs=[vmem] * 14,
        out_specs=vmem,
        scratch_shapes=[pltpu.VMEM((T, feat_dim), jnp.float32)],
    )(x,
      params["wih_t"], params["whh_t"], params["b_lstm"],
      params["w1_t"], params["b1"],
      params["w2_t"], params["b2"],
      params["w3_t"], params["b3"],
      params["w4_t"], params["b4"],
      params["w5_t"], params["b5"])


# --------------------------- parameter init ----------------------------------
def init_params(key, input_size, hidden_size, h1, h2, h3, h4, n_labels):
    exog_dim = input_size - LSTM_IN
    fc1_in = 2 * hidden_size + exog_dim
    dims = [(fc1_in, h1), (h1, h2), (h2, h3), (h3, h4), (h4, n_labels)]

    keys = jax.random.split(key, 4 + 2 * len(dims))
    ki = iter(range(len(keys)))

    def unif(k, shape, fan_in):
        bound = 1.0 / jnp.sqrt(float(fan_in))
        return jax.random.uniform(k, shape, jnp.float32, -bound, bound)

    H = hidden_size
    params = {}
    # nn.LSTM parameters, uniform(-1/sqrt(H), 1/sqrt(H)); stored transposed.
    # Heavy input->gates weight is kept in bf16 (halves HBM traffic, native
    # MXU dtype); the tiny recurrent weight and biases stay f32.
    params["wih_t"] = unif(keys[next(ki)], (LSTM_IN, 4 * H), H).astype(jnp.bfloat16)
    params["whh_t"] = unif(keys[next(ki)], (H, 4 * H), H)
    b_ih = unif(keys[next(ki)], (1, 4 * H), H)
    b_hh = unif(keys[next(ki)], (1, 4 * H), H)
    params["b_lstm"] = b_ih + b_hh
    # nn.Linear parameters, uniform(-1/sqrt(fan_in), 1/sqrt(fan_in)); bf16 weights.
    for idx, (fin, fout) in enumerate(dims, start=1):
        params[f"w{idx}_t"] = unif(keys[next(ki)], (fin, fout), fin).astype(jnp.bfloat16)
        params[f"b{idx}"] = unif(keys[next(ki)], (1, fout), fin)
    return params


if __name__ == "__main__":
    # Small shapes consistent with the module:
    #   input_size = 1440 + 16 exogenous features -> exog branch active
    batch = 8
    exog_dim = 16
    input_size = LSTM_IN + exog_dim
    hidden_size, h1, h2, h3, h4, n_labels = 32, 64, 64, 32, 32, 4

    key = jax.random.PRNGKey(0)
    k_x, k_p = jax.random.split(key)
    x = jax.random.normal(k_x, (batch, input_size), jnp.float32)
    params = init_params(k_p, input_size, hidden_size, h1, h2, h3, h4, n_labels)

    out = jax.jit(lstm_hidden_forward)(x, params)
    out = jax.block_until_ready(out)
    assert out.shape == (batch, n_labels)
    assert bool(jnp.all(jnp.isfinite(out)))
    print("KERNEL_OK")
</pallas_src>

<mosaic_0001>
module attributes {stable_mosaic.version = 11 : i64} {
  func.func @_fused_kernel(%arg0: memref<8x1456xf32, #tpu.memory_space<vmem>>, %arg1: memref<1440x128xbf16, #tpu.memory_space<vmem>>, %arg2: memref<32x128xf32, #tpu.memory_space<vmem>>, %arg3: memref<1x128xf32, #tpu.memory_space<vmem>>, %arg4: memref<80x64xbf16, #tpu.memory_space<vmem>>, %arg5: memref<1x64xf32, #tpu.memory_space<vmem>>, %arg6: memref<64x64xbf16, #tpu.memory_space<vmem>>, %arg7: memref<1x64xf32, #tpu.memory_space<vmem>>, %arg8: memref<64x32xbf16, #tpu.memory_space<vmem>>, %arg9: memref<1x32xf32, #tpu.memory_space<vmem>>, %arg10: memref<32x32xbf16, #tpu.memory_space<vmem>>, %arg11: memref<1x32xf32, #tpu.memory_space<vmem>>, %arg12: memref<32x4xbf16, #tpu.memory_space<vmem>>, %arg13: memref<1x4xf32, #tpu.memory_space<vmem>>, %arg14: memref<8x4xf32, #tpu.memory_space<vmem>>, %arg15: memref<8x80xf32, #tpu.memory_space<vmem>>) attributes {dimension_semantics = [], scalar_prefetch = 0 : i64, scratch_operands = 1 : i64, tpu.core_type = #tpu.core_type<tc>} {
    %c0 = arith.constant 0 : index
    %c0_0 = arith.constant 0 : index
    %0 = vector.load %arg0[%c0, %c0_0] : memref<8x1456xf32, #tpu.memory_space<vmem>>, vector<8x1440xf32>
    %1 = arith.truncf %0 : vector<8x1440xf32> to vector<8x1440xbf16>
    %c0_1 = arith.constant 0 : index
    %c0_2 = arith.constant 0 : index
    %2 = vector.load %arg1[%c0_1, %c0_2] : memref<1440x128xbf16, #tpu.memory_space<vmem>>, vector<1440x128xbf16>
    %cst = arith.constant dense<0.000000e+00> : vector<8x128xf32>
    %3 = tpu.matmul %1, %2, %cst {dimension_numbers = #tpu.dot_dimension_numbers<[1], [0], [0], [1], [0, 0, 1, 1], [], []>} : vector<8x1440xbf16>, vector<1440x128xbf16>, vector<8x128xf32> -> vector<8x128xf32>
    %c0_3 = arith.constant 0 : index
    %c0_4 = arith.constant 0 : index
    %4 = vector.load %arg3[%c0_3, %c0_4] : memref<1x128xf32, #tpu.memory_space<vmem>>, vector<1x128xf32>
    %5 = vector.broadcast %4 : vector<1x128xf32> to vector<8x128xf32>
    %6 = arith.addf %3, %5 : vector<8x128xf32>
    %c0_5 = arith.constant 0 : index
    %c0_6 = arith.constant 0 : index
    %7 = vector.load %arg2[%c0_5, %c0_6] : memref<32x128xf32, #tpu.memory_space<vmem>>, vector<32x128xf32>
    %cst_7 = arith.constant 0.000000e+00 : f32
    %8 = vector.broadcast %cst_7 : f32 to vector<1x32xf32>
    %cst_8 = arith.constant 0.000000e+00 : f32
    %9 = vector.broadcast %cst_8 : f32 to vector<1x32xf32>
    %10 = vector.extract_strided_slice %6 {offsets = [0, 0], sizes = [1, 128], strides = [1, 1]} : vector<8x128xf32> to vector<1x128xf32>
    %cst_9 = arith.constant dense<0.000000e+00> : vector<1x128xf32>
    %11 = tpu.matmul %8, %7, %cst_9 {dimension_numbers = #tpu.dot_dimension_numbers<[1], [0], [0], [1], [0, 0, 1, 1], [], []>} : vector<1x32xf32>, vector<32x128xf32>, vector<1x128xf32> -> vector<1x128xf32>
    %12 = arith.addf %10, %11 : vector<1x128xf32>
    %13 = arith.negf %12 : vector<1x128xf32>
    %14 = math.exp %13 : vector<1x128xf32>
    %cst_10 = arith.constant 1.000000e+00 : f32
    %15 = vector.broadcast %cst_10 : f32 to vector<1x128xf32>
    %16 = arith.addf %15, %14 : vector<1x128xf32>
    %17 = arith.divf %15, %16 : vector<1x128xf32>
    %18 = math.tanh %12 : vector<1x128xf32>
    %19 = vector.extract_strided_slice %17 {offsets = [0, 0], sizes = [1, 32], strides = [1, 1]} : vector<1x128xf32> to vector<1x32xf32>
    %20 = vector.extract_strided_slice %17 {offsets = [0, 32], sizes = [1, 32], strides = [1, 1]} : vector<1x128xf32> to vector<1x32xf32>
    %21 = vector.extract_strided_slice %18 {offsets = [0, 64], sizes = [1, 32], strides = [1, 1]} : vector<1x128xf32> to vector<1x32xf32>
    %22 = vector.extract_strided_slice %17 {offsets = [0, 96], sizes = [1, 32], strides = [1, 1]} : vector<1x128xf32> to vector<1x32xf32>
    %23 = arith.mulf %20, %9 : vector<1x32xf32>
    %24 = arith.mulf %19, %21 : vector<1x32xf32>
    %25 = arith.addf %23, %24 : vector<1x32xf32>
    %26 = math.tanh %25 : vector<1x32xf32>
    %27 = arith.mulf %22, %26 : vector<1x32xf32>
    %c0_11 = arith.constant 0 : index
    %c0_12 = arith.constant 0 : index
    %28 = vector.load %arg15[%c0_11, %c0_12] : memref<8x80xf32, #tpu.memory_space<vmem>>, vector<1x32xf32>
    tpu.vector_store %arg15[%c0_11, %c0_12], %27 {strides = array<i32>} : memref<8x80xf32, #tpu.memory_space<vmem>>, vector<1x32xf32>,
    %29 = vector.extract_strided_slice %6 {offsets = [1, 0], sizes = [1, 128], strides = [1, 1]} : vector<8x128xf32> to vector<1x128xf32>
    %cst_13 = arith.constant dense<0.000000e+00> : vector<1x128xf32>
    %30 = tpu.matmul %27, %7, %cst_13 {dimension_numbers = #tpu.dot_dimension_numbers<[1], [0], [0], [1], [0, 0, 1, 1], [], []>} : vector<1x32xf32>, vector<32x128xf32>, vector<1x128xf32> -> vector<1x128xf32>
    %31 = arith.addf %29, %30 : vector<1x128xf32>
    %32 = arith.negf %31 : vector<1x128xf32>
    %33 = math.exp %32 : vector<1x128xf32>
    %cst_14 = arith.constant 1.000000e+00 : f32
    %34 = vector.broadcast %cst_14 : f32 to vector<1x128xf32>
    %35 = arith.addf %34, %33 : vector<1x128xf32>
    %36 = arith.divf %34, %35 : vector<1x128xf32>
    %37 = math.tanh %31 : vector<1x128xf32>
    %38 = vector.extract_strided_slice %36 {offsets = [0, 0], sizes = [1, 32], strides = [1, 1]} : vector<1x128xf32> to vector<1x32xf32>
    %39 = vector.extract_strided_slice %36 {offsets = [0, 32], sizes = [1, 32], strides = [1, 1]} : vector<1x128xf32> to vector<1x32xf32>
    %40 = vector.extract_strided_slice %37 {offsets = [0, 64], sizes = [1, 32], strides = [1, 1]} : vector<1x128xf32> to vector<1x32xf32>
    %41 = vector.extract_strided_slice %36 {offsets = [0, 96], sizes = [1, 32], strides = [1, 1]} : vector<1x128xf32> to vector<1x32xf32>
    %42 = arith.mulf %39, %25 : vector<1x32xf32>
    %43 = arith.mulf %38, %40 : vector<1x32xf32>
    %44 = arith.addf %42, %43 : vector<1x32xf32>
    %45 = math.tanh %44 : vector<1x32xf32>
    %46 = arith.mulf %41, %45 : vector<1x32xf32>
    %c1 = arith.constant 1 : index
    %c0_15 = arith.constant 0 : index
    %47 = vector.load %arg15[%c1, %c0_15] : memref<8x80xf32, #tpu.memory_space<vmem>>, vector<1x32xf32>
    tpu.vector_store %arg15[%c1, %c0_15], %46 {strides = array<i32>} : memref<8x80xf32, #tpu.memory_space<vmem>>, vector<1x32xf32>,
    %48 = vector.extract_strided_slice %6 {offsets = [2, 0], sizes = [1, 128], strides = [1, 1]} : vector<8x128xf32> to vector<1x128xf32>
    %cst_16 = arith.constant dense<0.000000e+00> : vector<1x128xf32>
    %49 = tpu.matmul %46, %7, %cst_16 {dimension_numbers = #tpu.dot_dimension_numbers<[1], [0], [0], [1], [0, 0, 1, 1], [], []>} : vector<1x32xf32>, vector<32x128xf32>, vector<1x128xf32> -> vector<1x128xf32>
    %50 = arith.addf %48, %49 : vector<1x128xf32>
    %51 = arith.negf %50 : vector<1x128xf32>
    %52 = math.exp %51 : vector<1x128xf32>
    %cst_17 = arith.constant 1.000000e+00 : f32
    %53 = vector.broadcast %cst_17 : f32 to vector<1x128xf32>
    %54 = arith.addf %53, %52 : vector<1x128xf32>
    %55 = arith.divf %53, %54 : vector<1x128xf32>
    %56 = math.tanh %50 : vector<1x128xf32>
    %57 = vector.extract_strided_slice %55 {offsets = [0, 0], sizes = [1, 32], strides = [1, 1]} : vector<1x128xf32> to vector<1x32xf32>
    %58 = vector.extract_strided_slice %55 {offsets = [0, 32], sizes = [1, 32], strides = [1, 1]} : vector<1x128xf32> to vector<1x32xf32>
    %59 = vector.extract_strided_slice %56 {offsets = [0, 64], sizes = [1, 32], strides = [1, 1]} : vector<1x128xf32> to vector<1x32xf32>
    %60 = vector.extract_strided_slice %55 {offsets = [0, 96], sizes = [1, 32], strides = [1, 1]} : vector<1x128xf32> to vector<1x32xf32>
    %61 = arith.mulf %58, %44 : vector<1x32xf32>
    %62 = arith.mulf %57, %59 : vector<1x32xf32>
    %63 = arith.addf %61, %62 : vector<1x32xf32>
    %64 = math.tanh %63 : vector<1x32xf32>
    %65 = arith.mulf %60, %64 : vector<1x32xf32>
    %c2 = arith.constant 2 : index
    %c0_18 = arith.constant 0 : index
    %66 = vector.load %arg15[%c2, %c0_18] : memref<8x80xf32, #tpu.memory_space<vmem>>, vector<1x32xf32>
    tpu.vector_store %arg15[%c2, %c0_18], %65 {strides = array<i32>} : memref<8x80xf32, #tpu.memory_space<vmem>>, vector<1x32xf32>,
    %67 = vector.extract_strided_slice %6 {offsets = [3, 0], sizes = [1, 128], strides = [1, 1]} : vector<8x128xf32> to vector<1x128xf32>
    %cst_19 = arith.constant dense<0.000000e+00> : vector<1x128xf32>
    %68 = tpu.matmul %65, %7, %cst_19 {dimension_numbers = #tpu.dot_dimension_numbers<[1], [0], [0], [1], [0, 0, 1, 1], [], []>} : vector<1x32xf32>, vector<32x128xf32>, vector<1x128xf32> -> vector<1x128xf32>
    %69 = arith.addf %67, %68 : vector<1x128xf32>
    %70 = arith.negf %69 : vector<1x128xf32>
    %71 = math.exp %70 : vector<1x128xf32>
    %cst_20 = arith.constant 1.000000e+00 : f32
    %72 = vector.broadcast %cst_20 : f32 to vector<1x128xf32>
    %73 = arith.addf %72, %71 : vector<1x128xf32>
    %74 = arith.divf %72, %73 : vector<1x128xf32>
    %75 = math.tanh %69 : vector<1x128xf32>
    %76 = vector.extract_strided_slice %74 {offsets = [0, 0], sizes = [1, 32], strides = [1, 1]} : vector<1x128xf32> to vector<1x32xf32>
    %77 = vector.extract_strided_slice %74 {offsets = [0, 32], sizes = [1, 32], strides = [1, 1]} : vector<1x128xf32> to vector<1x32xf32>
    %78 = vector.extract_strided_slice %75 {offsets = [0, 64], sizes = [1, 32], strides = [1, 1]} : vector<1x128xf32> to vector<1x32xf32>
    %79 = vector.extract_strided_slice %74 {offsets = [0, 96], sizes = [1, 32], strides = [1, 1]} : vector<1x128xf32> to vector<1x32xf32>
    %80 = arith.mulf %77, %63 : vector<1x32xf32>
    %81 = arith.mulf %76, %78 : vector<1x32xf32>
    %82 = arith.addf %80, %81 : vector<1x32xf32>
    %83 = math.tanh %82 : vector<1x32xf32>
    %84 = arith.mulf %79, %83 : vector<1x32xf32>
    %c3 = arith.constant 3 : index
    %c0_21 = arith.constant 0 : index
    %85 = vector.load %arg15[%c3, %c0_21] : memref<8x80xf32, #tpu.memory_space<vmem>>, vector<1x32xf32>
    tpu.vector_store %arg15[%c3, %c0_21], %84 {strides = array<i32>} : memref<8x80xf32, #tpu.memory_space<vmem>>, vector<1x32xf32>,
    %86 = vector.extract_strided_slice %6 {offsets = [4, 0], sizes = [1, 128], strides = [1, 1]} : vector<8x128xf32> to vector<1x128xf32>
    %cst_22 = arith.constant dense<0.000000e+00> : vector<1x128xf32>
    %87 = tpu.matmul %84, %7, %cst_22 {dimension_numbers = #tpu.dot_dimension_numbers<[1], [0], [0], [1], [0, 0, 1, 1], [], []>} : vector<1x32xf32>, vector<32x128xf32>, vector<1x128xf32> -> vector<1x128xf32>
    %88 = arith.addf %86, %87 : vector<1x128xf32>
    %89 = arith.negf %88 : vector<1x128xf32>
    %90 = math.exp %89 : vector<1x128xf32>
    %cst_23 = arith.constant 1.000000e+00 : f32
    %91 = vector.broadcast %cst_23 : f32 to vector<1x128xf32>
    %92 = arith.addf %91, %90 : vector<1x128xf32>
    %93 = arith.divf %91, %92 : vector<1x128xf32>
    %94 = math.tanh %88 : vector<1x128xf32>
    %95 = vector.extract_strided_slice %93 {offsets = [0, 0], sizes = [1, 32], strides = [1, 1]} : vector<1x128xf32> to vector<1x32xf32>
    %96 = vector.extract_strided_slice %93 {offsets = [0, 32], sizes = [1, 32], strides = [1, 1]} : vector<1x128xf32> to vector<1x32xf32>
    %97 = vector.extract_strided_slice %94 {offsets = [0, 64], sizes = [1, 32], strides = [1, 1]} : vector<1x128xf32> to vector<1x32xf32>
    %98 = vector.extract_strided_slice %93 {offsets = [0, 96], sizes = [1, 32], strides = [1, 1]} : vector<1x128xf32> to vector<1x32xf32>
    %99 = arith.mulf %96, %82 : vector<1x32xf32>
    %100 = arith.mulf %95, %97 : vector<1x32xf32>
    %101 = arith.addf %99, %100 : vector<1x32xf32>
    %102 = math.tanh %101 : vector<1x32xf32>
    %103 = arith.mulf %98, %102 : vector<1x32xf32>
    %c4 = arith.constant 4 : index
    %c0_24 = arith.constant 0 : index
    %104 = vector.load %arg15[%c4, %c0_24] : memref<8x80xf32, #tpu.memory_space<vmem>>, vector<1x32xf32>
    tpu.vector_store %arg15[%c4, %c0_24], %103 {strides = array<i32>} : memref<8x80xf32, #tpu.memory_space<vmem>>, vector<1x32xf32>,
    %105 = vector.extract_strided_slice %6 {offsets = [5, 0], sizes = [1, 128], strides = [1, 1]} : vector<8x128xf32> to vector<1x128xf32>
    %cst_25 = arith.constant dense<0.000000e+00> : vector<1x128xf32>
    %106 = tpu.matmul %103, %7, %cst_25 {dimension_numbers = #tpu.dot_dimension_numbers<[1], [0], [0], [1], [0, 0, 1, 1], [], []>} : vector<1x32xf32>, vector<32x128xf32>, vector<1x128xf32> -> vector<1x128xf32>
    %107 = arith.addf %105, %106 : vector<1x128xf32>
    %108 = arith.negf %107 : vector<1x128xf32>
    %109 = math.exp %108 : vector<1x128xf32>
    %cst_26 = arith.constant 1.000000e+00 : f32
    %110 = vector.broadcast %cst_26 : f32 to vector<1x128xf32>
    %111 = arith.addf %110, %109 : vector<1x128xf32>
    %112 = arith.divf %110, %111 : vector<1x128xf32>
    %113 = math.tanh %107 : vector<1x128xf32>
    %114 = vector.extract_strided_slice %112 {offsets = [0, 0], sizes = [1, 32], strides = [1, 1]} : vector<1x128xf32> to vector<1x32xf32>
    %115 = vector.extract_strided_slice %112 {offsets = [0, 32], sizes = [1, 32], strides = [1, 1]} : vector<1x128xf32> to vector<1x32xf32>
    %116 = vector.extract_strided_slice %113 {offsets = [0, 64], sizes = [1, 32], strides = [1, 1]} : vector<1x128xf32> to vector<1x32xf32>
    %117 = vector.extract_strided_slice %112 {offsets = [0, 96], sizes = [1, 32], strides = [1, 1]} : vector<1x128xf32> to vector<1x32xf32>
    %118 = arith.mulf %115, %101 : vector<1x32xf32>
    %119 = arith.mulf %114, %116 : vector<1x32xf32>
    %120 = arith.addf %118, %119 : vector<1x32xf32>
    %121 = math.tanh %120 : vector<1x32xf32>
    %122 = arith.mulf %117, %121 : vector<1x32xf32>
    %c5 = arith.constant 5 : index
    %c0_27 = arith.constant 0 : index
    %123 = vector.load %arg15[%c5, %c0_27] : memref<8x80xf32, #tpu.memory_space<vmem>>, vector<1x32xf32>
    tpu.vector_store %arg15[%c5, %c0_27], %122 {strides = array<i32>} : memref<8x80xf32, #tpu.memory_space<vmem>>, vector<1x32xf32>,
    %124 = vector.extract_strided_slice %6 {offsets = [6, 0], sizes = [1, 128], strides = [1, 1]} : vector<8x128xf32> to vector<1x128xf32>
    %cst_28 = arith.constant dense<0.000000e+00> : vector<1x128xf32>
    %125 = tpu.matmul %122, %7, %cst_28 {dimension_numbers = #tpu.dot_dimension_numbers<[1], [0], [0], [1], [0, 0, 1, 1], [], []>} : vector<1x32xf32>, vector<32x128xf32>, vector<1x128xf32> -> vector<1x128xf32>
    %126 = arith.addf %124, %125 : vector<1x128xf32>
    %127 = arith.negf %126 : vector<1x128xf32>
    %128 = math.exp %127 : vector<1x128xf32>
    %cst_29 = arith.constant 1.000000e+00 : f32
    %129 = vector.broadcast %cst_29 : f32 to vector<1x128xf32>
    %130 = arith.addf %129, %128 : vector<1x128xf32>
    %131 = arith.divf %129, %130 : vector<1x128xf32>
    %132 = math.tanh %126 : vector<1x128xf32>
    %133 = vector.extract_strided_slice %131 {offsets = [0, 0], sizes = [1, 32], strides = [1, 1]} : vector<1x128xf32> to vector<1x32xf32>
    %134 = vector.extract_strided_slice %131 {offsets = [0, 32], sizes = [1, 32], strides = [1, 1]} : vector<1x128xf32> to vector<1x32xf32>
    %135 = vector.extract_strided_slice %132 {offsets = [0, 64], sizes = [1, 32], strides = [1, 1]} : vector<1x128xf32> to vector<1x32xf32>
    %136 = vector.extract_strided_slice %131 {offsets = [0, 96], sizes = [1, 32], strides = [1, 1]} : vector<1x128xf32> to vector<1x32xf32>
    %137 = arith.mulf %134, %120 : vector<1x32xf32>
    %138 = arith.mulf %133, %135 : vector<1x32xf32>
    %139 = arith.addf %137, %138 : vector<1x32xf32>
    %140 = math.tanh %139 : vector<1x32xf32>
    %141 = arith.mulf %136, %140 : vector<1x32xf32>
    %c6 = arith.constant 6 : index
    %c0_30 = arith.constant 0 : index
    %142 = vector.load %arg15[%c6, %c0_30] : memref<8x80xf32, #tpu.memory_space<vmem>>, vector<1x32xf32>
    tpu.vector_store %arg15[%c6, %c0_30], %141 {strides = array<i32>} : memref<8x80xf32, #tpu.memory_space<vmem>>, vector<1x32xf32>,
    %143 = vector.extract_strided_slice %6 {offsets = [7, 0], sizes = [1, 128], strides = [1, 1]} : vector<8x128xf32> to vector<1x128xf32>
    %cst_31 = arith.constant dense<0.000000e+00> : vector<1x128xf32>
    %144 = tpu.matmul %141, %7, %cst_31 {dimension_numbers = #tpu.dot_dimension_numbers<[1], [0], [0], [1], [0, 0, 1, 1], [], []>} : vector<1x32xf32>, vector<32x128xf32>, vector<1x128xf32> -> vector<1x128xf32>
    %145 = arith.addf %143, %144 : vector<1x128xf32>
    %146 = arith.negf %145 : vector<1x128xf32>
    %147 = math.exp %146 : vector<1x128xf32>
    %cst_32 = arith.constant 1.000000e+00 : f32
    %148 = vector.broadcast %cst_32 : f32 to vector<1x128xf32>
    %149 = arith.addf %148, %147 : vector<1x128xf32>
    %150 = arith.divf %148, %149 : vector<1x128xf32>
    %151 = math.tanh %145 : vector<1x128xf32>
    %152 = vector.extract_strided_slice %150 {offsets = [0, 0], sizes = [1, 32], strides = [1, 1]} : vector<1x128xf32> to vector<1x32xf32>
    %153 = vector.extract_strided_slice %150 {offsets = [0, 32], sizes = [1, 32], strides = [1, 1]} : vector<1x128xf32> to vector<1x32xf32>
    %154 = vector.extract_strided_slice %151 {offsets = [0, 64], sizes = [1, 32], strides = [1, 1]} : vector<1x128xf32> to vector<1x32xf32>
    %155 = vector.extract_strided_slice %150 {offsets = [0, 96], sizes = [1, 32], strides = [1, 1]} : vector<1x128xf32> to vector<1x32xf32>
    %156 = arith.mulf %153, %139 : vector<1x32xf32>
    %157 = arith.mulf %152, %154 : vector<1x32xf32>
    %158 = arith.addf %156, %157 : vector<1x32xf32>
    %159 = math.tanh %158 : vector<1x32xf32>
    %160 = arith.mulf %155, %159 : vector<1x32xf32>
    %c7 = arith.constant 7 : index
    %c0_33 = arith.constant 0 : index
    %161 = vector.load %arg15[%c7, %c0_33] : memref<8x80xf32, #tpu.memory_space<vmem>>, vector<1x32xf32>
    tpu.vector_store %arg15[%c7, %c0_33], %160 {strides = array<i32>} : memref<8x80xf32, #tpu.memory_space<vmem>>, vector<1x32xf32>,
    %162 = vector.shape_cast %160 : vector<1x32xf32> to vector<1x32xf32>
    %163 = vector.broadcast %162 : vector<1x32xf32> to vector<8x32xf32>
    %c0_34 = arith.constant 0 : index
    %c32 = arith.constant 32 : index
    %164 = vector.load %arg15[%c0_34, %c32] : memref<8x80xf32, #tpu.memory_space<vmem>>, vector<8x32xf32>
    tpu.vector_store %arg15[%c0_34, %c32], %163 {strides = array<i32>} : memref<8x80xf32, #tpu.memory_space<vmem>>, vector<8x32xf32>,
    %c0_35 = arith.constant 0 : index
    %c1440 = arith.constant 1440 : index
    %165 = vector.load %arg0[%c0_35, %c1440] : memref<8x1456xf32, #tpu.memory_space<vmem>>, vector<8x16xf32>
    %c0_36 = arith.constant 0 : index
    %c64 = arith.constant 64 : index
    %166 = vector.load %arg15[%c0_36, %c64] : memref<8x80xf32, #tpu.memory_space<vmem>>, vector<8x16xf32>
    tpu.vector_store %arg15[%c0_36, %c64], %165 {strides = array<i32>} : memref<8x80xf32, #tpu.memory_space<vmem>>, vector<8x16xf32>,
    %c0_37 = arith.constant 0 : index
    %c0_38 = arith.constant 0 : index
    %167 = vector.load %arg15[%c0_37, %c0_38] : memref<8x80xf32, #tpu.memory_space<vmem>>, vector<8x80xf32>
    %168 = arith.truncf %167 : vector<8x80xf32> to vector<8x80xbf16>
    %c0_39 = arith.constant 0 : index
    %c0_40 = arith.constant 0 : index
    %169 = vector.load %arg4[%c0_39, %c0_40] : memref<80x64xbf16, #tpu.memory_space<vmem>>, vector<80x64xbf16>
    %cst_41 = arith.constant dense<0.000000e+00> : vector<8x64xf32>
    %170 = tpu.matmul %168, %169, %cst_41 {dimension_numbers = #tpu.dot_dimension_numbers<[1], [0], [0], [1], [0, 0, 1, 1], [], []>} : vector<8x80xbf16>, vector<80x64xbf16>, vector<8x64xf32> -> vector<8x64xf32>
    %c0_42 = arith.constant 0 : index
    %c0_43 = arith.constant 0 : index
    %171 = vector.load %arg5[%c0_42, %c0_43] : memref<1x64xf32, #tpu.memory_space<vmem>>, vector<1x64xf32>
    %172 = vector.broadcast %171 : vector<1x64xf32> to vector<8x64xf32>
    %173 = arith.addf %170, %172 : vector<8x64xf32>
    %cst_44 = arith.constant 0.000000e+00 : f32
    %174 = vector.broadcast %cst_44 : f32 to vector<8x64xf32>
    %175 = arith.maximumf %173, %174 : vector<8x64xf32>
    %176 = arith.truncf %175 : vector<8x64xf32> to vector<8x64xbf16>
    %c0_45 = arith.constant 0 : index
    %c0_46 = arith.constant 0 : index
    %177 = vector.load %arg6[%c0_45, %c0_46] : memref<64x64xbf16, #tpu.memory_space<vmem>>, vector<64x64xbf16>
    %cst_47 = arith.constant dense<0.000000e+00> : vector<8x64xf32>
    %178 = tpu.matmul %176, %177, %cst_47 {dimension_numbers = #tpu.dot_dimension_numbers<[1], [0], [0], [1], [0, 0, 1, 1], [], []>} : vector<8x64xbf16>, vector<64x64xbf16>, vector<8x64xf32> -> vector<8x64xf32>
    %c0_48 = arith.constant 0 : index
    %c0_49 = arith.constant 0 : index
    %179 = vector.load %arg7[%c0_48, %c0_49] : memref<1x64xf32, #tpu.memory_space<vmem>>, vector<1x64xf32>
    %180 = vector.broadcast %179 : vector<1x64xf32> to vector<8x64xf32>
    %181 = arith.addf %178, %180 : vector<8x64xf32>
    %cst_50 = arith.constant 0.000000e+00 : f32
    %182 = vector.broadcast %cst_50 : f32 to vector<8x64xf32>
    %183 = arith.maximumf %181, %182 : vector<8x64xf32>
    %184 = arith.truncf %183 : vector<8x64xf32> to vector<8x64xbf16>
    %c0_51 = arith.constant 0 : index
    %c0_52 = arith.constant 0 : index
    %185 = vector.load %arg8[%c0_51, %c0_52] : memref<64x32xbf16, #tpu.memory_space<vmem>>, vector<64x32xbf16>
    %cst_53 = arith.constant dense<0.000000e+00> : vector<8x32xf32>
    %186 = tpu.matmul %184, %185, %cst_53 {dimension_numbers = #tpu.dot_dimension_numbers<[1], [0], [0], [1], [0, 0, 1, 1], [], []>} : vector<8x64xbf16>, vector<64x32xbf16>, vector<8x32xf32> -> vector<8x32xf32>
    %c0_54 = arith.constant 0 : index
    %c0_55 = arith.constant 0 : index
    %187 = vector.load %arg9[%c0_54, %c0_55] : memref<1x32xf32, #tpu.memory_space<vmem>>, vector<1x32xf32>
    %188 = vector.broadcast %187 : vector<1x32xf32> to vector<8x32xf32>
    %189 = arith.addf %186, %188 : vector<8x32xf32>
    %cst_56 = arith.constant 0.000000e+00 : f32
    %190 = vector.broadcast %cst_56 : f32 to vector<8x32xf32>
    %191 = arith.maximumf %189, %190 : vector<8x32xf32>
    %192 = arith.truncf %191 : vector<8x32xf32> to vector<8x32xbf16>
    %c0_57 = arith.constant 0 : index
    %c0_58 = arith.constant 0 : index
    %193 = vector.load %arg10[%c0_57, %c0_58] : memref<32x32xbf16, #tpu.memory_space<vmem>>, vector<32x32xbf16>
    %cst_59 = arith.constant dense<0.000000e+00> : vector<8x32xf32>
    %194 = tpu.matmul %192, %193, %cst_59 {dimension_numbers = #tpu.dot_dimension_numbers<[1], [0], [0], [1], [0, 0, 1, 1], [], []>} : vector<8x32xbf16>, vector<32x32xbf16>, vector<8x32xf32> -> vector<8x32xf32>
    %c0_60 = arith.constant 0 : index
    %c0_61 = arith.constant 0 : index
    %195 = vector.load %arg11[%c0_60, %c0_61] : memref<1x32xf32, #tpu.memory_space<vmem>>, vector<1x32xf32>
    %196 = vector.broadcast %195 : vector<1x32xf32> to vector<8x32xf32>
    %197 = arith.addf %194, %196 : vector<8x32xf32>
    %cst_62 = arith.constant 0.000000e+00 : f32
    %198 = vector.broadcast %cst_62 : f32 to vector<8x32xf32>
    %199 = arith.maximumf %197, %198 : vector<8x32xf32>
    %200 = arith.truncf %199 : vector<8x32xf32> to vector<8x32xbf16>
    %c0_63 = arith.constant 0 : index
    %c0_64 = arith.constant 0 : index
    %201 = vector.load %arg12[%c0_63, %c0_64] : memref<32x4xbf16, #tpu.memory_space<vmem>>, vector<32x4xbf16>
    %cst_65 = arith.constant dense<0.000000e+00> : vector<8x4xf32>
    %202 = tpu.matmul %200, %201, %cst_65 {dimension_numbers = #tpu.dot_dimension_numbers<[1], [0], [0], [1], [0, 0, 1, 1], [], []>} : vector<8x32xbf16>, vector<32x4xbf16>, vector<8x4xf32> -> vector<8x4xf32>
    %c0_66 = arith.constant 0 : index
    %c0_67 = arith.constant 0 : index
    %203 = vector.load %arg13[%c0_66, %c0_67] : memref<1x4xf32, #tpu.memory_space<vmem>>, vector<1x4xf32>
    %204 = vector.broadcast %203 : vector<1x4xf32> to vector<8x4xf32>
    %205 = arith.addf %202, %204 : vector<8x4xf32>
    %206 = arith.negf %205 : vector<8x4xf32>
    %207 = math.exp %206 : vector<8x4xf32>
    %cst_68 = arith.constant 1.000000e+00 : f32
    %208 = vector.broadcast %cst_68 : f32 to vector<8x4xf32>
    %209 = arith.addf %208, %207 : vector<8x4xf32>
    %210 = arith.divf %208, %209 : vector<8x4xf32>
    %c0_69 = arith.constant 0 : index
    %c0_70 = arith.constant 0 : index
    %211 = vector.load %arg14[%c0_69, %c0_70] : memref<8x4xf32, #tpu.memory_space<vmem>>, vector<8x4xf32>
    tpu.vector_store %arg14[%c0_69, %c0_70], %210 {strides = array<i32>} : memref<8x4xf32, #tpu.memory_space<vmem>>, vector<8x4xf32>,
    return
  }
}

</mosaic_0001>

<llo_original>
// kernel: lstm_hidden_forward.1
$region0: #{lstm_hidden_forward.1}
  #allocation0 [shape = 'u32[]', space=smem, size = 0x4, offset = 0x4, fixed_abs, tag = 'smem constant byte address 0x4 - core index']
  #allocation1 [shape = 'u32[144,128]{1,0:T(1,128)}', space=vmem, size = 0x12000, scoped, tag = 'internal scratch']
  #allocation2 [shape = 'f32[8,80]{1,0:T(8,128)}', space=vmem, size = 0x1000, scoped, tag = 'scratch operand']
  %s0 = inlined_call_operand.vmem [shape: f32[8,1456], index: 0, kind: input, shape index: {}]
  %s1 = inlined_call_operand.hbm [shape: bf16[1440,128], index: 1, kind: input, shape index: {}]
  %s2 = inlined_call_operand.vmem [shape: f32[32,128], index: 2, kind: input, shape index: {}]
  %s3 = inlined_call_operand.hbm [shape: f32[1,128], index: 3, kind: input, shape index: {}]
  %s4 = inlined_call_operand.vmem [shape: bf16[80,64], index: 4, kind: input, shape index: {}]
  %s5 = inlined_call_operand.hbm [shape: f32[1,64], index: 5, kind: input, shape index: {}]
  %s6 = inlined_call_operand.vmem [shape: bf16[64,64], index: 6, kind: input, shape index: {}]
  %s7 = inlined_call_operand.hbm [shape: f32[1,64], index: 7, kind: input, shape index: {}]
  %s8 = inlined_call_operand.vmem [shape: bf16[64,32], index: 8, kind: input, shape index: {}]
  %s9 = inlined_call_operand.hbm [shape: f32[1,32], index: 9, kind: input, shape index: {}]
  %s10 = inlined_call_operand.hbm [shape: bf16[32,32], index: 10, kind: input, shape index: {}]
  %s11 = inlined_call_operand.hbm [shape: f32[1,32], index: 11, kind: input, shape index: {}]
  %s12 = inlined_call_operand.vmem [shape: bf16[32,4], index: 12, kind: input, shape index: {}]
  %s13 = inlined_call_operand.hbm [shape: f32[1,4], index: 13, kind: input, shape index: {}]
  %s14 = inlined_call_operand.vmem [shape: f32[8,4], index: 14, kind: output, shape index: {}]
  %s15 = sld [smem:[#allocation0]]
  $region98: #{lstm_hidden_forward.1} parent=0
    _
  %s17 = ssub.s32 1, %s15
  %s18 = scalar_select 0, %s17, %s15
  $region1: #{lstm_hidden_forward.1} parent=0
    #allocation3 [shape = 'u8[368640]{0}', space=vmem, size = 0x5a000, scoped, tag = 'input window, operand 1, single buffered']
    #allocation4 [shape = 's32[1]{0}', space=sflag, size = 0x4, scoped, tag = 'scoped memory for lstm_hidden_forward.1']
    #allocation5 [shape = 'u8[512]{0}', space=vmem, size = 0x400, scoped, tag = 'input window, operand 3, single buffered']
    #allocation6 [shape = 's32[1]{0}', space=sflag, size = 0x4, scoped, tag = 'scoped memory for lstm_hidden_forward.1']
    #allocation7 [shape = 'u8[512]{0}', space=vmem, size = 0x400, scoped, tag = 'input window, operand 5, single buffered']
    #allocation8 [shape = 'u8[512]{0}', space=vmem, size = 0x400, scoped, tag = 'input window, operand 7, single buffered']
    #allocation9 [shape = 's32[1]{0}', space=sflag, size = 0x4, scoped, tag = 'scoped memory for lstm_hidden_forward.1']
    #allocation10 [shape = 'u8[512]{0}', space=vmem, size = 0x400, scoped, tag = 'input window, operand 9, single buffered']
    #allocation11 [shape = 'u8[8192]{0}', space=vmem, size = 0x2000, scoped, tag = 'input window, operand 10, single buffered']
    #allocation12 [shape = 's32[1]{0}', space=sflag, size = 0x4, scoped, tag = 'scoped memory for lstm_hidden_forward.1']
    #allocation13 [shape = 'u8[512]{0}', space=vmem, size = 0x400, scoped, tag = 'input window, operand 11, single buffered']
    #allocation14 [shape = 'u8[512]{0}', space=vmem, size = 0x400, scoped, tag = 'input window, operand 13, single buffered']
    #allocation15 [shape = 's32[1]{0}', space=sflag, size = 0x4, scoped, tag = 'scoped memory for lstm_hidden_forward.1']
    %19 = vsyncpa [#allocation4], 0
    %20 = vsyncpa [#allocation6], 0
    %21 = vsyncpa [#allocation9], 0
    %22 = vsyncpa [#allocation12], 0
    %23 = vsyncpa [#allocation15], 0
    // Predicated region
    $region2: #{lstm_hidden_forward.1} parent=1 // pred_check
      _
    $region3: #{lstm_hidden_forward.1} parent=1 // pred_check_branch
      %25 = sbr.rel (0) target = $region5
    $region4: #{lstm_hidden_forward.1} parent=1 // pred_region
      _
    $region5: #{lstm_hidden_forward.1} parent=1 // pred_fallthru
      _
    // Predicated region
    $region6: #{lstm_hidden_forward.1} parent=1 // pred_check
      _
    $region7: #{lstm_hidden_forward.1} parent=1 // pred_check_branch
      %27 = sbr.rel (0) target = $region9
    $region8: #{lstm_hidden_forward.1} parent=1 // pred_region
      %s29 = ssub.s32 11520, 11520
      %30 = vsyncadd [#allocation4], %s29
      %s31 = sshll.u32 [#allocation3], 4
      %s32 = int_to_ptr.vmem [resolvable:$true] %s31
      %37 = dma.hbm_to_vmem [thread:$0]  %s1, 11520, %s32, [#allocation4], 64, 64, 4
    $region9: #{lstm_hidden_forward.1} parent=1 // pred_fallthru
      _
    // Predicated region
    $region10: #{lstm_hidden_forward.1} parent=1 // pred_check
      _
    $region11: #{lstm_hidden_forward.1} parent=1 // pred_check_branch
      %39 = sbr.rel (0) target = $region13
    $region12: #{lstm_hidden_forward.1} parent=1 // pred_region
      _
    $region13: #{lstm_hidden_forward.1} parent=1 // pred_fallthru
      _
    // Predicated region
    $region14: #{lstm_hidden_forward.1} parent=1 // pred_check
      _
    $region15: #{lstm_hidden_forward.1} parent=1 // pred_check_branch
      %41 = sbr.rel (0) target = $region17
    $region16: #{lstm_hidden_forward.1} parent=1 // pred_region
      %s43 = ssub.s32 16, 16
      %44 = vsyncadd [#allocation6], %s43
      %s46 = sshll.u32 [#allocation5], 4
      %s47 = int_to_ptr.vmem [resolvable:$true] %s46
      %49 = dma.hbm_to_vmem [thread:$0]  %s3, 16, %s47, [#allocation6]
    $region17: #{lstm_hidden_forward.1} parent=1 // pred_fallthru
      _
    // Predicated region
    $region18: #{lstm_hidden_forward.1} parent=1 // pred_check
      _
    $region19: #{lstm_hidden_forward.1} parent=1 // pred_check_branch
      %51 = sbr.rel (0) target = $region21
    $region20: #{lstm_hidden_forward.1} parent=1 // pred_region
      _
    $region21: #{lstm_hidden_forward.1} parent=1 // pred_fallthru
      _
    // Predicated region
    $region22: #{lstm_hidden_forward.1} parent=1 // pred_check
      _
    $region23: #{lstm_hidden_forward.1} parent=1 // pred_check_branch
      %53 = sbr.rel (0) target = $region25
    $region24: #{lstm_hidden_forward.1} parent=1 // pred_region
      %s55 = ssub.s32 16, 16
      %56 = vsyncadd [#allocation6], %s55
      %s58 = sshll.u32 [#allocation7], 4
      %s59 = int_to_ptr.vmem [resolvable:$true] %s58
      %61 = dma.hbm_to_vmem [thread:$0]  %s5, 16, %s59, [#allocation6]
    $region25: #{lstm_hidden_forward.1} parent=1 // pred_fallthru
      _
    // Predicated region
    $region26: #{lstm_hidden_forward.1} parent=1 // pred_check
      _
    $region27: #{lstm_hidden_forward.1} parent=1 // pred_check_branch
      %63 = sbr.rel (0) target = $region29
    $region28: #{lstm_hidden_forward.1} parent=1 // pred_region
      _
    $region29: #{lstm_hidden_forward.1} parent=1 // pred_fallthru
      _
    // Predicated region
    $region30: #{lstm_hidden_forward.1} parent=1 // pred_check
      _
    $region31: #{lstm_hidden_forward.1} parent=1 // pred_check_branch
      %65 = sbr.rel (0) target = $region33
    $region32: #{lstm_hidden_forward.1} parent=1 // pred_region
      %s67 = ssub.s32 16, 16
      %68 = vsyncadd [#allocation9], %s67
      %s70 = sshll.u32 [#allocation8], 4
      %s71 = int_to_ptr.vmem [resolvable:$true] %s70
      %73 = dma.hbm_to_vmem [thread:$0]  %s7, 16, %s71, [#allocation9]
    $region33: #{lstm_hidden_forward.1} parent=1 // pred_fallthru
      _
    // Predicated region
    $region34: #{lstm_hidden_forward.1} parent=1 // pred_check
      _
    $region35: #{lstm_hidden_forward.1} parent=1 // pred_check_branch
      %75 = sbr.rel (0) target = $region37
    $region36: #{lstm_hidden_forward.1} parent=1 // pred_region
      _
    $region37: #{lstm_hidden_forward.1} parent=1 // pred_fallthru
      _
    // Predicated region
    $region38: #{lstm_hidden_forward.1} parent=1 // pred_check
      _
    $region39: #{lstm_hidden_forward.1} parent=1 // pred_check_branch
      %77 = sbr.rel (0) target = $region41
    $region40: #{lstm_hidden_forward.1} parent=1 // pred_region
      %s79 = ssub.s32 16, 16
      %80 = vsyncadd [#allocation9], %s79
      %s82 = sshll.u32 [#allocation10], 4
      %s83 = int_to_ptr.vmem [resolvable:$true] %s82
      %85 = dma.hbm_to_vmem [thread:$0]  %s9, 16, %s83, [#allocation9]
    $region41: #{lstm_hidden_forward.1} parent=1 // pred_fallthru
      _
    // Predicated region
    $region42: #{lstm_hidden_forward.1} parent=1 // pred_check
      _
    $region43: #{lstm_hidden_forward.1} parent=1 // pred_check_branch
      %87 = sbr.rel (0) target = $region45
    $region44: #{lstm_hidden_forward.1} parent=1 // pred_region
      %s89 = ssub.s32 256, 256
      %90 = vsyncadd [#allocation12], %s89
      %s91 = sshll.u32 [#allocation11], 4
      %s92 = int_to_ptr.vmem [resolvable:$true] %s91
      %97 = dma.hbm_to_vmem [thread:$0]  %s10, 256, %s92, [#allocation12], 64, 64, 4
    $region45: #{lstm_hidden_forward.1} parent=1 // pred_fallthru
      _
    // Predicated region
    $region46: #{lstm_hidden_forward.1} parent=1 // pred_check
      _
    $region47: #{lstm_hidden_forward.1} parent=1 // pred_check_branch
      %99 = sbr.rel (0) target = $region49
    $region48: #{lstm_hidden_forward.1} parent=1 // pred_region
      %s101 = ssub.s32 16, 16
      %102 = vsyncadd [#allocation12], %s101
      %s104 = sshll.u32 [#allocation13], 4
      %s105 = int_to_ptr.vmem [resolvable:$true] %s104
      %107 = dma.hbm_to_vmem [thread:$0]  %s11, 16, %s105, [#allocation12]
    $region49: #{lstm_hidden_forward.1} parent=1 // pred_fallthru
      _
    // Predicated region
    $region50: #{lstm_hidden_forward.1} parent=1 // pred_check
      _
    $region51: #{lstm_hidden_forward.1} parent=1 // pred_check_branch
      %109 = sbr.rel (0) target = $region53
    $region52: #{lstm_hidden_forward.1} parent=1 // pred_region
      _
    $region53: #{lstm_hidden_forward.1} parent=1 // pred_fallthru
      _
    // Predicated region
    $region54: #{lstm_hidden_forward.1} parent=1 // pred_check
      _
    $region55: #{lstm_hidden_forward.1} parent=1 // pred_check_branch
      %111 = sbr.rel (0) target = $region57
    $region56: #{lstm_hidden_forward.1} parent=1 // pred_region
      %s113 = ssub.s32 16, 16
      %114 = vsyncadd [#allocation15], %s113
      %s116 = sshll.u32 [#allocation14], 4
      %s117 = int_to_ptr.vmem [resolvable:$true] %s116
      %119 = dma.hbm_to_vmem [thread:$0]  %s13, 16, %s117, [#allocation15]
    $region57: #{lstm_hidden_forward.1} parent=1 // pred_fallthru
      _
    // Predicated region
    $region58: #{lstm_hidden_forward.1} parent=1 // pred_check
      _
    $region59: #{lstm_hidden_forward.1} parent=1 // pred_check_branch
      %121 = sbr.rel (0) target = $region61
    $region60: #{lstm_hidden_forward.1} parent=1 // pred_region
      %122 = dma.done [#allocation4], 11520
    $region61: #{lstm_hidden_forward.1} parent=1 // pred_fallthru
      _
    // Predicated region
    $region62: #{lstm_hidden_forward.1} parent=1 // pred_check
      _
    $region63: #{lstm_hidden_forward.1} parent=1 // pred_check_branch
      %124 = sbr.rel (0) target = $region65
    $region64: #{lstm_hidden_forward.1} parent=1 // pred_region
      %125 = dma.done [#allocation6], 16
    $region65: #{lstm_hidden_forward.1} parent=1 // pred_fallthru
      _
    // Predicated region
    $region66: #{lstm_hidden_forward.1} parent=1 // pred_check
      _
    $region67: #{lstm_hidden_forward.1} parent=1 // pred_check_branch
      %127 = sbr.rel (0) target = $region69
    $region68: #{lstm_hidden_forward.1} parent=1 // pred_region
      %128 = dma.done [#allocation6], 16
    $region69: #{lstm_hidden_forward.1} parent=1 // pred_fallthru
      _
    // Predicated region
    $region70: #{lstm_hidden_forward.1} parent=1 // pred_check
      _
    $region71: #{lstm_hidden_forward.1} parent=1 // pred_check_branch
      %130 = sbr.rel (0) target = $region73
    $region72: #{lstm_hidden_forward.1} parent=1 // pred_region
      %131 = dma.done [#allocation9], 16
    $region73: #{lstm_hidden_forward.1} parent=1 // pred_fallthru
      _
    // Predicated region
    $region74: #{lstm_hidden_forward.1} parent=1 // pred_check
      _
    $region75: #{lstm_hidden_forward.1} parent=1 // pred_check_branch
      %133 = sbr.rel (0) target = $region77
    $region76: #{lstm_hidden_forward.1} parent=1 // pred_region
      %134 = dma.done [#allocation9], 16
    $region77: #{lstm_hidden_forward.1} parent=1 // pred_fallthru
      _
    // Predicated region
    $region78: #{lstm_hidden_forward.1} parent=1 // pred_check
      _
    $region79: #{lstm_hidden_forward.1} parent=1 // pred_check_branch
      %136 = sbr.rel (0) target = $region81
    $region80: #{lstm_hidden_forward.1} parent=1 // pred_region
      %137 = dma.done [#allocation12], 256
    $region81: #{lstm_hidden_forward.1} parent=1 // pred_fallthru
      _
    // Predicated region
    $region82: #{lstm_hidden_forward.1} parent=1 // pred_check
      _
    $region83: #{lstm_hidden_forward.1} parent=1 // pred_check_branch
      %139 = sbr.rel (0) target = $region85
    $region84: #{lstm_hidden_forward.1} parent=1 // pred_region
      %140 = dma.done [#allocation12], 16
    $region85: #{lstm_hidden_forward.1} parent=1 // pred_fallthru
      _
    // Predicated region
    $region86: #{lstm_hidden_forward.1} parent=1 // pred_check
      _
    $region87: #{lstm_hidden_forward.1} parent=1 // pred_check_branch
      %142 = sbr.rel (0) target = $region89
    $region88: #{lstm_hidden_forward.1} parent=1 // pred_region
      %143 = dma.done [#allocation15], 16
    $region89: #{lstm_hidden_forward.1} parent=1 // pred_fallthru
      _
    %v145 = vld [vmem:[%s0] sm:$0xff]
    %v146 = vld [vmem:[%s0 + $0x8] sm:$0xff]
    %v147 = vld [vmem:[%s0 + $0x10] sm:$0xff]
    %v148 = vld [vmem:[%s0 + $0x18] sm:$0xff]
    %v149 = vld [vmem:[%s0 + $0x20] sm:$0xff]
    %v150 = vld [vmem:[%s0 + $0x28] sm:$0xff]
    %v151 = vld [vmem:[%s0 + $0x30] sm:$0xff]
    %v152 = vld [vmem:[%s0 + $0x38] sm:$0xff]
    %v153 = vld [vmem:[%s0 + $0x40] sm:$0xff]
    %v154 = vld [vmem:[%s0 + $0x48] sm:$0xff]
    %v155 = vld [vmem:[%s0 + $0x50] sm:$0xff]
    %v156 = vld [vmem:[%s0 + $0x58] sm:$0xff]
    %v157 = vpack.c.bf16 %v145, %v145
    %v158 = vpack.c.bf16 %v146, %v146
    %v159 = vpack.c.bf16 %v147, %v147
    %v160 = vpack.c.bf16 %v148, %v148
    %v161 = vpack.c.bf16 %v149, %v149
    %v162 = vpack.c.bf16 %v150, %v150
    %v163 = vpack.c.bf16 %v151, %v151
    %v164 = vpack.c.bf16 %v152, %v152
    %v165 = vpack.c.bf16 %v153, %v153
    %v166 = vpack.c.bf16 %v154, %v154
    %v167 = vpack.c.bf16 %v155, %v155
    %v168 = vpack.c.bf16 %v156, %v156
    %v169 = vld [vmem:[#allocation3] sm:$0xf]
    %v170 = vld [vmem:[#allocation3 + $0x4] sm:$0xf]
    %v171 = vld [vmem:[#allocation3 + $0x8] sm:$0xf]
    %v172 = vld [vmem:[#allocation3 + $0xc] sm:$0xf]
    %v173 = vld [vmem:[#allocation3 + $0x10] sm:$0xf]
    %v174 = vld [vmem:[#allocation3 + $0x14] sm:$0xf]
    %v175 = vld [vmem:[#allocation3 + $0x18] sm:$0xf]
    %v176 = vld [vmem:[#allocation3 + $0x1c] sm:$0xf]
    %v177 = vld [vmem:[#allocation3 + $0x20] sm:$0xf]
    %v178 = vld [vmem:[#allocation3 + $0x24] sm:$0xf]
    %v179 = vld [vmem:[#allocation3 + $0x28] sm:$0xf]
    %v180 = vld [vmem:[#allocation3 + $0x2c] sm:$0xf]
    %v181 = vld [vmem:[#allocation3 + $0x30] sm:$0xf]
    %v182 = vld [vmem:[#allocation3 + $0x34] sm:$0xf]
    %v183 = vld [vmem:[#allocation3 + $0x38] sm:$0xf]
    %v184 = vld [vmem:[#allocation3 + $0x3c] sm:$0xf]
    %v185 = vld [vmem:[#allocation3 + $0x40] sm:$0xf]
    %v186 = vld [vmem:[#allocation3 + $0x44] sm:$0xf]
    %v187 = vld [vmem:[#allocation3 + $0x48] sm:$0xf]
    %v188 = vld [vmem:[#allocation3 + $0x4c] sm:$0xf]
    %v189 = vld [vmem:[#allocation3 + $0x50] sm:$0xf]
    %v190 = vld [vmem:[#allocation3 + $0x54] sm:$0xf]
    %v191 = vld [vmem:[#allocation3 + $0x58] sm:$0xf]
    %v192 = vld [vmem:[#allocation3 + $0x5c] sm:$0xf]
    %v193 = vld [vmem:[#allocation3 + $0x60] sm:$0xf]
    %v194 = vld [vmem:[#allocation3 + $0x64] sm:$0xf]
    %v195 = vld [vmem:[#allocation3 + $0x68] sm:$0xf]
    %v196 = vld [vmem:[#allocation3 + $0x6c] sm:$0xf]
    %v197 = vld [vmem:[#allocation3 + $0x70] sm:$0xf]
    %v198 = vld [vmem:[#allocation3 + $0x74] sm:$0xf]
    %v199 = vld [vmem:[#allocation3 + $0x78] sm:$0xf]
    %v200 = vld [vmem:[#allocation3 + $0x7c] sm:$0xf]
    %v201 = vld [vmem:[#allocation3 + $0x80] sm:$0xf]
    %v202 = vld [vmem:[#allocation3 + $0x84] sm:$0xf]
    %v203 = vld [vmem:[#allocation3 + $0x88] sm:$0xf]
    %v204 = vld [vmem:[#allocation3 + $0x8c] sm:$0xf]
    %v205 = vld [vmem:[#allocation3 + $0x90] sm:$0xf]
    %v206 = vld [vmem:[#allocation3 + $0x94] sm:$0xf]
    %v207 = vld [vmem:[#allocation3 + $0x98] sm:$0xf]
    %v208 = vld [vmem:[#allocation3 + $0x9c] sm:$0xf]
    %v209 = vld [vmem:[#allocation3 + $0xa0] sm:$0xf]
    %v210 = vld [vmem:[#allocation3 + $0xa4] sm:$0xf]
    %v211 = vld [vmem:[#allocation3 + $0xa8] sm:$0xf]
    %v212 = vld [vmem:[#allocation3 + $0xac] sm:$0xf]
    %v213 = vld [vmem:[#allocation3 + $0xb0] sm:$0xf]
    %v214 = vld [vmem:[#allocation3 + $0xb4] sm:$0xf]
    %v215 = vld [vmem:[#allocation3 + $0xb8] sm:$0xf]
    %v216 = vld [vmem:[#allocation3 + $0xbc] sm:$0xf]
    %v217 = vld [vmem:[#allocation3 + $0xc0] sm:$0xf]
    %v218 = vld [vmem:[#allocation3 + $0xc4] sm:$0xf]
    %v219 = vld [vmem:[#allocation3 + $0xc8] sm:$0xf]
    %v220 = vld [vmem:[#allocation3 + $0xcc] sm:$0xf]
    %v221 = vld [vmem:[#allocation3 + $0xd0] sm:$0xf]
    %v222 = vld [vmem:[#allocation3 + $0xd4] sm:$0xf]
    %v223 = vld [vmem:[#allocation3 + $0xd8] sm:$0xf]
    %v224 = vld [vmem:[#allocation3 + $0xdc] sm:$0xf]
    %v225 = vld [vmem:[#allocation3 + $0xe0] sm:$0xf]
    %v226 = vld [vmem:[#allocation3 + $0xe4] sm:$0xf]
    %v227 = vld [vmem:[#allocation3 + $0xe8] sm:$0xf]
    %v228 = vld [vmem:[#allocation3 + $0xec] sm:$0xf]
    %v229 = vld [vmem:[#allocation3 + $0xf0] sm:$0xf]
    %v230 = vld [vmem:[#allocation3 + $0xf4] sm:$0xf]
    %v231 = vld [vmem:[#allocation3 + $0xf8] sm:$0xf]
    %v232 = vld [vmem:[#allocation3 + $0xfc] sm:$0xf]
    %v233 = vld [vmem:[#allocation3 + $0x100] sm:$0xf]
    %v234 = vld [vmem:[#allocation3 + $0x104] sm:$0xf]
    %v235 = vld [vmem:[#allocation3 + $0x108] sm:$0xf]
    %v236 = vld [vmem:[#allocation3 + $0x10c] sm:$0xf]
    %v237 = vld [vmem:[#allocation3 + $0x110] sm:$0xf]
    %v238 = vld [vmem:[#allocation3 + $0x114] sm:$0xf]
    %v239 = vld [vmem:[#allocation3 + $0x118] sm:$0xf]
    %v240 = vld [vmem:[#allocation3 + $0x11c] sm:$0xf]
    %v241 = vld [vmem:[#allocation3 + $0x120] sm:$0xf]
    %v242 = vld [vmem:[#allocation3 + $0x124] sm:$0xf]
    %v243 = vld [vmem:[#allocation3 + $0x128] sm:$0xf]
    %v244 = vld [vmem:[#allocation3 + $0x12c] sm:$0xf]
    %v245 = vld [vmem:[#allocation3 + $0x130] sm:$0xf]
    %v246 = vld [vmem:[#allocation3 + $0x134] sm:$0xf]
    %v247 = vld [vmem:[#allocation3 + $0x138] sm:$0xf]
    %v248 = vld [vmem:[#allocation3 + $0x13c] sm:$0xf]
    %v249 = vld [vmem:[#allocation3 + $0x140] sm:$0xf]
    %v250 = vld [vmem:[#allocation3 + $0x144] sm:$0xf]
    %v251 = vld [vmem:[#allocation3 + $0x148] sm:$0xf]
    %v252 = vld [vmem:[#allocation3 + $0x14c] sm:$0xf]
    %v253 = vld [vmem:[#allocation3 + $0x150] sm:$0xf]
    %v254 = vld [vmem:[#allocation3 + $0x154] sm:$0xf]
    %v255 = vld [vmem:[#allocation3 + $0x158] sm:$0xf]
    %v256 = vld [vmem:[#allocation3 + $0x15c] sm:$0xf]
    %v257 = vld [vmem:[#allocation3 + $0x160] sm:$0xf]
    %v258 = vld [vmem:[#allocation3 + $0x164] sm:$0xf]
    %v259 = vld [vmem:[#allocation3 + $0x168] sm:$0xf]
    %v260 = vld [vmem:[#allocation3 + $0x16c] sm:$0xf]
    %v261 = vld [vmem:[#allocation3 + $0x170] sm:$0xf]
    %v262 = vld [vmem:[#allocation3 + $0x174] sm:$0xf]
    %v263 = vld [vmem:[#allocation3 + $0x178] sm:$0xf]
    %v264 = vld [vmem:[#allocation3 + $0x17c] sm:$0xf]
    %v265 = vld [vmem:[#allocation3 + $0x180] sm:$0xf]
    %v266 = vld [vmem:[#allocation3 + $0x184] sm:$0xf]
    %v267 = vld [vmem:[#allocation3 + $0x188] sm:$0xf]
    %v268 = vld [vmem:[#allocation3 + $0x18c] sm:$0xf]
    %v269 = vld [vmem:[#allocation3 + $0x190] sm:$0xf]
    %v270 = vld [vmem:[#allocation3 + $0x194] sm:$0xf]
    %v271 = vld [vmem:[#allocation3 + $0x198] sm:$0xf]
    %v272 = vld [vmem:[#allocation3 + $0x19c] sm:$0xf]
    %v273 = vld [vmem:[#allocation3 + $0x1a0] sm:$0xf]
    %v274 = vld [vmem:[#allocation3 + $0x1a4] sm:$0xf]
    %v275 = vld [vmem:[#allocation3 + $0x1a8] sm:$0xf]
    %v276 = vld [vmem:[#allocation3 + $0x1ac] sm:$0xf]
    %v277 = vld [vmem:[#allocation3 + $0x1b0] sm:$0xf]
    %v278 = vld [vmem:[#allocation3 + $0x1b4] sm:$0xf]
    %v279 = vld [vmem:[#allocation3 + $0x1b8] sm:$0xf]
    %v280 = vld [vmem:[#allocation3 + $0x1bc] sm:$0xf]
    %v281 = vld [vmem:[#allocation3 + $0x1c0] sm:$0xf]
    %v282 = vld [vmem:[#allocation3 + $0x1c4] sm:$0xf]
    %v283 = vld [vmem:[#allocation3 + $0x1c8] sm:$0xf]
    %v284 = vld [vmem:[#allocation3 + $0x1cc] sm:$0xf]
    %v285 = vld [vmem:[#allocation3 + $0x1d0] sm:$0xf]
    %v286 = vld [vmem:[#allocation3 + $0x1d4] sm:$0xf]
    %v287 = vld [vmem:[#allocation3 + $0x1d8] sm:$0xf]
    %v288 = vld [vmem:[#allocation3 + $0x1dc] sm:$0xf]
    %v289 = vld [vmem:[#allocation3 + $0x1e0] sm:$0xf]
    %v290 = vld [vmem:[#allocation3 + $0x1e4] sm:$0xf]
    %v291 = vld [vmem:[#allocation3 + $0x1e8] sm:$0xf]
    %v292 = vld [vmem:[#allocation3 + $0x1ec] sm:$0xf]
    %v293 = vld [vmem:[#allocation3 + $0x1f0] sm:$0xf]
    %v294 = vld [vmem:[#allocation3 + $0x1f4] sm:$0xf]
    %v295 = vld [vmem:[#allocation3 + $0x1f8] sm:$0xf]
    %v296 = vld [vmem:[#allocation3 + $0x1fc] sm:$0xf]
    %v297 = vld [vmem:[#allocation3 + $0x200] sm:$0xf]
    %v298 = vld [vmem:[#allocation3 + $0x204] sm:$0xf]
    %v299 = vld [vmem:[#allocation3 + $0x208] sm:$0xf]
    %v300 = vld [vmem:[#allocation3 + $0x20c] sm:$0xf]
    %v301 = vld [vmem:[#allocation3 + $0x210] sm:$0xf]
    %v302 = vld [vmem:[#allocation3 + $0x214] sm:$0xf]
    %v303 = vld [vmem:[#allocation3 + $0x218] sm:$0xf]
    %v304 = vld [vmem:[#allocation3 + $0x21c] sm:$0xf]
    %v305 = vld [vmem:[#allocation3 + $0x220] sm:$0xf]
    %v306 = vld [vmem:[#allocation3 + $0x224] sm:$0xf]
    %v307 = vld [vmem:[#allocation3 + $0x228] sm:$0xf]
    %v308 = vld [vmem:[#allocation3 + $0x22c] sm:$0xf]
    %v309 = vld [vmem:[#allocation3 + $0x230] sm:$0xf]
    %v310 = vld [vmem:[#allocation3 + $0x234] sm:$0xf]
    %v311 = vld [vmem:[#allocation3 + $0x238] sm:$0xf]
    %v312 = vld [vmem:[#allocation3 + $0x23c] sm:$0xf]
    %v313 = vld [vmem:[#allocation3 + $0x240] sm:$0xf]
    %v314 = vld [vmem:[#allocation3 + $0x244] sm:$0xf]
    %v315 = vld [vmem:[#allocation3 + $0x248] sm:$0xf]
    %v316 = vld [vmem:[#allocation3 + $0x24c] sm:$0xf]
    %v317 = vld [vmem:[#allocation3 + $0x250] sm:$0xf]
    %v318 = vld [vmem:[#allocation3 + $0x254] sm:$0xf]
    %v319 = vld [vmem:[#allocation3 + $0x258] sm:$0xf]
    %v320 = vld [vmem:[#allocation3 + $0x25c] sm:$0xf]
    %v321 = vld [vmem:[#allocation3 + $0x260] sm:$0xf]
    %v322 = vld [vmem:[#allocation3 + $0x264] sm:$0xf]
    %v323 = vld [vmem:[#allocation3 + $0x268] sm:$0xf]
    %v324 = vld [vmem:[#allocation3 + $0x26c] sm:$0xf]
    %v325 = vld [vmem:[#allocation3 + $0x270] sm:$0xf]
    %v326 = vld [vmem:[#allocation3 + $0x274] sm:$0xf]
    %v327 = vld [vmem:[#allocation3 + $0x278] sm:$0xf]
    %v328 = vld [vmem:[#allocation3 + $0x27c] sm:$0xf]
    %v329 = vld [vmem:[#allocation3 + $0x280] sm:$0xf]
    %v330 = vld [vmem:[#allocation3 + $0x284] sm:$0xf]
    %v331 = vld [vmem:[#allocation3 + $0x288] sm:$0xf]
    %v332 = vld [vmem:[#allocation3 + $0x28c] sm:$0xf]
    %v333 = vld [vmem:[#allocation3 + $0x290] sm:$0xf]
    %v334 = vld [vmem:[#allocation3 + $0x294] sm:$0xf]
    %v335 = vld [vmem:[#allocation3 + $0x298] sm:$0xf]
    %v336 = vld [vmem:[#allocation3 + $0x29c] sm:$0xf]
    %v337 = vld [vmem:[#allocation3 + $0x2a0] sm:$0xf]
    %v338 = vld [vmem:[#allocation3 + $0x2a4] sm:$0xf]
    %v339 = vld [vmem:[#allocation3 + $0x2a8] sm:$0xf]
    %v340 = vld [vmem:[#allocation3 + $0x2ac] sm:$0xf]
    %v341 = vld [vmem:[#allocation3 + $0x2b0] sm:$0xf]
    %v342 = vld [vmem:[#allocation3 + $0x2b4] sm:$0xf]
    %v343 = vld [vmem:[#allocation3 + $0x2b8] sm:$0xf]
    %v344 = vld [vmem:[#allocation3 + $0x2bc] sm:$0xf]
    %v345 = vld [vmem:[#allocation3 + $0x2c0] sm:$0xf]
    %v346 = vld [vmem:[#allocation3 + $0x2c4] sm:$0xf]
    %v347 = vld [vmem:[#allocation3 + $0x2c8] sm:$0xf]
    %v348 = vld [vmem:[#allocation3 + $0x2cc] sm:$0xf]
    %v349 = vld [vmem:[#allocation5] sm:$0x1]
    %v351 = vlaneseq
    %v352 = vshrl.u32 %v351, 7
    %v353 = vsub.s32 0, %v352
    %v354 = vrot.slane %v349, %v353
    %v536 = vunpack.c.l.b16 %v169
    %v537 = vunpack.c.l.b16 %v170
    %v538 = vunpack.c.l.b16 %v171
    %v539 = vunpack.c.l.b16 %v172
    %v540 = vunpack.c.l.b16 %v173
    %v541 = vunpack.c.l.b16 %v174
    %v542 = vunpack.c.l.b16 %v175
    %v543 = vunpack.c.l.b16 %v176
    %v544 = vunpack.c.l.b16 %v177
    %v545 = vunpack.c.l.b16 %v178
    %v546 = vunpack.c.l.b16 %v179
    %v547 = vunpack.c.l.b16 %v180
    %v548 = vunpack.c.l.b16 %v181
    %v549 = vunpack.c.l.b16 %v182
    %v550 = vunpack.c.l.b16 %v183
    %v551 = vunpack.c.l.b16 %v184
    %v552 = vunpack.c.l.b16 %v185
    %v553 = vunpack.c.l.b16 %v186
    %v554 = vunpack.c.l.b16 %v187
    %v555 = vunpack.c.l.b16 %v188
    %v556 = vunpack.c.l.b16 %v189
    %v557 = vunpack.c.l.b16 %v190
    %v558 = vunpack.c.l.b16 %v191
    %v559 = vunpack.c.l.b16 %v192
    %v560 = vunpack.c.l.b16 %v193
    %v561 = vunpack.c.l.b16 %v194
    %v562 = vunpack.c.l.b16 %v195
    %v563 = vunpack.c.l.b16 %v196
    %v564 = vunpack.c.l.b16 %v197
    %v565 = vunpack.c.l.b16 %v198
    %v566 = vunpack.c.l.b16 %v199
    %v567 = vunpack.c.l.b16 %v200
    %v568 = vunpack.c.l.b16 %v201
    %v569 = vunpack.c.l.b16 %v202
    %v570 = vunpack.c.l.b16 %v203
    %v571 = vunpack.c.l.b16 %v204
    %v572 = vunpack.c.l.b16 %v205
    %v573 = vunpack.c.l.b16 %v206
    %v574 = vunpack.c.l.b16 %v207
    %v575 = vunpack.c.l.b16 %v208
    %v576 = vunpack.c.l.b16 %v209
    %v577 = vunpack.c.l.b16 %v210
    %v578 = vunpack.c.l.b16 %v211
    %v579 = vunpack.c.l.b16 %v212
    %v580 = vunpack.c.l.b16 %v213
    %v581 = vunpack.c.l.b16 %v214
    %v582 = vunpack.c.l.b16 %v215
    %v583 = vunpack.c.l.b16 %v216
    %v584 = vunpack.c.l.b16 %v217
    %v585 = vunpack.c.l.b16 %v218
    %v586 = vunpack.c.l.b16 %v219
    %v587 = vunpack.c.l.b16 %v220
    %v588 = vunpack.c.l.b16 %v221
    %v589 = vunpack.c.l.b16 %v222
    %v590 = vunpack.c.l.b16 %v223
    %v591 = vunpack.c.l.b16 %v224
    %v592 = vunpack.c.l.b16 %v225
    %v593 = vunpack.c.l.b16 %v226
    %v594 = vunpack.c.l.b16 %v227
    %v595 = vunpack.c.l.b16 %v228
    %v596 = vunpack.c.l.b16 %v229
    %v597 = vunpack.c.l.b16 %v230
    %v598 = vunpack.c.l.b16 %v231
    %v599 = vunpack.c.l.b16 %v232
    %v600 = vunpack.c.l.b16 %v233
    %v601 = vunpack.c.l.b16 %v234
    %v602 = vunpack.c.l.b16 %v235
    %v603 = vunpack.c.l.b16 %v236
    %v604 = vunpack.c.l.b16 %v237
    %v605 = vunpack.c.l.b16 %v238
    %v606 = vunpack.c.l.b16 %v239
    %v607 = vunpack.c.l.b16 %v240
    %v608 = vunpack.c.l.b16 %v241
    %v609 = vunpack.c.l.b16 %v242
    %v610 = vunpack.c.l.b16 %v243
    %v611 = vunpack.c.l.b16 %v244
    %v612 = vunpack.c.l.b16 %v245
    %v613 = vunpack.c.l.b16 %v246
    %v614 = vunpack.c.l.b16 %v247
    %v615 = vunpack.c.l.b16 %v248
    %v616 = vunpack.c.l.b16 %v249
    %v617 = vunpack.c.l.b16 %v250
    %v618 = vunpack.c.l.b16 %v251
    %v619 = vunpack.c.l.b16 %v252
    %v620 = vunpack.c.l.b16 %v253
    %v621 = vunpack.c.l.b16 %v254
    %v622 = vunpack.c.l.b16 %v255
    %v623 = vunpack.c.l.b16 %v256
    %v624 = vunpack.c.l.b16 %v257
    %v625 = vunpack.c.l.b16 %v258
    %v626 = vunpack.c.l.b16 %v259
    %v627 = vunpack.c.l.b16 %v260
    %v628 = vunpack.c.l.b16 %v261
    %v629 = vunpack.c.l.b16 %v262
    %v630 = vunpack.c.l.b16 %v263
    %v631 = vunpack.c.l.b16 %v264
    %v632 = vunpack.c.l.b16 %v265
    %v633 = vunpack.c.l.b16 %v266
    %v634 = vunpack.c.l.b16 %v267
    %v635 = vunpack.c.l.b16 %v268
    %v636 = vunpack.c.l.b16 %v269
    %v637 = vunpack.c.l.b16 %v270
    %v638 = vunpack.c.l.b16 %v271
    %v639 = vunpack.c.l.b16 %v272
    %v640 = vunpack.c.l.b16 %v273
    %v641 = vunpack.c.l.b16 %v274
    %v642 = vunpack.c.l.b16 %v275
    %v643 = vunpack.c.l.b16 %v276
    %v644 = vunpack.c.l.b16 %v277
    %v645 = vunpack.c.l.b16 %v278
    %v646 = vunpack.c.l.b16 %v279
    %v647 = vunpack.c.l.b16 %v280
    %v648 = vunpack.c.l.b16 %v281
    %v649 = vunpack.c.l.b16 %v282
    %v650 = vunpack.c.l.b16 %v283
    %v651 = vunpack.c.l.b16 %v284
    %v652 = vunpack.c.l.b16 %v285
    %v653 = vunpack.c.l.b16 %v286
    %v654 = vunpack.c.l.b16 %v287
    %v655 = vunpack.c.l.b16 %v288
    %v656 = vunpack.c.l.b16 %v289
    %v657 = vunpack.c.l.b16 %v290
    %v658 = vunpack.c.l.b16 %v291
    %v659 = vunpack.c.l.b16 %v292
    %v660 = vunpack.c.l.b16 %v293
    %v661 = vunpack.c.l.b16 %v294
    %v662 = vunpack.c.l.b16 %v295
    %v663 = vunpack.c.l.b16 %v296
    %v664 = vunpack.c.l.b16 %v297
    %v665 = vunpack.c.l.b16 %v298
    %v666 = vunpack.c.l.b16 %v299
    %v667 = vunpack.c.l.b16 %v300
    %v668 = vunpack.c.l.b16 %v301
    %v669 = vunpack.c.l.b16 %v302
    %v670 = vunpack.c.l.b16 %v303
    %v671 = vunpack.c.l.b16 %v304
    %v672 = vunpack.c.l.b16 %v305
    %v673 = vunpack.c.l.b16 %v306
    %v674 = vunpack.c.l.b16 %v307
    %v675 = vunpack.c.l.b16 %v308
    %v676 = vunpack.c.l.b16 %v309
    %v677 = vunpack.c.l.b16 %v310
    %v678 = vunpack.c.l.b16 %v311
    %v679 = vunpack.c.l.b16 %v312
    %v680 = vunpack.c.l.b16 %v313
    %v681 = vunpack.c.l.b16 %v314
    %v682 = vunpack.c.l.b16 %v315
    %v683 = vunpack.c.l.b16 %v316
    %v684 = vunpack.c.l.b16 %v317
    %v685 = vunpack.c.l.b16 %v318
    %v686 = vunpack.c.l.b16 %v319
    %v687 = vunpack.c.l.b16 %v320
    %v688 = vunpack.c.l.b16 %v321
    %v689 = vunpack.c.l.b16 %v322
    %v690 = vunpack.c.l.b16 %v323
    %v691 = vunpack.c.l.b16 %v324
    %v692 = vunpack.c.l.b16 %v325
    %v693 = vunpack.c.l.b16 %v326
    %v694 = vunpack.c.l.b16 %v327
    %v695 = vunpack.c.l.b16 %v328
    %v696 = vunpack.c.l.b16 %v329
    %v697 = vunpack.c.l.b16 %v330
    %v698 = vunpack.c.l.b16 %v331
    %v699 = vunpack.c.l.b16 %v332
    %v700 = vunpack.c.l.b16 %v333
    %v701 = vunpack.c.l.b16 %v334
    %v702 = vunpack.c.l.b16 %v335
    %v703 = vunpack.c.l.b16 %v336
    %v704 = vunpack.c.l.b16 %v337
    %v705 = vunpack.c.l.b16 %v338
    %v706 = vunpack.c.l.b16 %v339
    %v707 = vunpack.c.l.b16 %v340
    %v708 = vunpack.c.l.b16 %v341
    %v709 = vunpack.c.l.b16 %v342
    %v710 = vunpack.c.l.b16 %v343
    %v711 = vunpack.c.l.b16 %v344
    %v712 = vunpack.c.l.b16 %v345
    %v713 = vunpack.c.l.b16 %v346
    %v714 = vunpack.c.l.b16 %v347
    %v715 = vunpack.c.l.b16 %v348
    %v716 = vpack.c.b16 %v537, %v536
    %v717 = vpack.c.b16 %v539, %v538
    %v718 = vpack.c.b16 %v541, %v540
    %v719 = vpack.c.b16 %v543, %v542
    %v720 = vpack.c.b16 %v545, %v544
    %v721 = vpack.c.b16 %v547, %v546
    %v722 = vpack.c.b16 %v549, %v548
    %v723 = vpack.c.b16 %v551, %v550
    %v724 = vpack.c.b16 %v553, %v552
    %v725 = vpack.c.b16 %v555, %v554
    %v726 = vpack.c.b16 %v557, %v556
    %v727 = vpack.c.b16 %v559, %v558
    %v728 = vpack.c.b16 %v561, %v560
    %v729 = vpack.c.b16 %v563, %v562
    %v730 = vpack.c.b16 %v565, %v564
    %v731 = vpack.c.b16 %v567, %v566
    %v732 = vpack.c.b16 %v569, %v568
    %v733 = vpack.c.b16 %v571, %v570
    %v734 = vpack.c.b16 %v573, %v572
    %v735 = vpack.c.b16 %v575, %v574
    %v736 = vpack.c.b16 %v577, %v576
    %v737 = vpack.c.b16 %v579, %v578
    %v738 = vpack.c.b16 %v581, %v580
    %v739 = vpack.c.b16 %v583, %v582
    %v740 = vpack.c.b16 %v585, %v584
    %v741 = vpack.c.b16 %v587, %v586
    %v742 = vpack.c.b16 %v589, %v588
    %v743 = vpack.c.b16 %v591, %v590
    %v744 = vpack.c.b16 %v593, %v592
    %v745 = vpack.c.b16 %v595, %v594
    %v746 = vpack.c.b16 %v597, %v596
    %v747 = vpack.c.b16 %v599, %v598
    %v748 = vpack.c.b16 %v601, %v600
    %v749 = vpack.c.b16 %v603, %v602
    %v750 = vpack.c.b16 %v605, %v604
    %v751 = vpack.c.b16 %v607, %v606
    %v752 = vpack.c.b16 %v609, %v608
    %v753 = vpack.c.b16 %v611, %v610
    %v754 = vpack.c.b16 %v613, %v612
    %v755 = vpack.c.b16 %v615, %v614
    %v756 = vpack.c.b16 %v617, %v616
    %v757 = vpack.c.b16 %v619, %v618
    %v758 = vpack.c.b16 %v621, %v620
    %v759 = vpack.c.b16 %v623, %v622
    %v760 = vpack.c.b16 %v625, %v624
    %v761 = vpack.c.b16 %v627, %v626
    %v762 = vpack.c.b16 %v629, %v628
    %v763 = vpack.c.b16 %v631, %v630
    %v764 = vpack.c.b16 %v633, %v632
    %v765 = vpack.c.b16 %v635, %v634
    %v766 = vpack.c.b16 %v637, %v636
    %v767 = vpack.c.b16 %v639, %v638
    %v768 = vpack.c.b16 %v641, %v640
    %v769 = vpack.c.b16 %v643, %v642
    %v770 = vpack.c.b16 %v645, %v644
    %v771 = vpack.c.b16 %v647, %v646
    %v772 = vpack.c.b16 %v649, %v648
    %v773 = vpack.c.b16 %v651, %v650
    %v774 = vpack.c.b16 %v653, %v652
    %v775 = vpack.c.b16 %v655, %v654
    %v776 = vpack.c.b16 %v657, %v656
    %v777 = vpack.c.b16 %v659, %v658
    %v778 = vpack.c.b16 %v661, %v660
    %v779 = vpack.c.b16 %v663, %v662
    %v780 = vpack.c.b16 %v665, %v664
    %v781 = vpack.c.b16 %v667, %v666
    %v782 = vpack.c.b16 %v669, %v668
    %v783 = vpack.c.b16 %v671, %v670
    %v784 = vpack.c.b16 %v673, %v672
    %v785 = vpack.c.b16 %v675, %v674
    %v786 = vpack.c.b16 %v677, %v676
    %v787 = vpack.c.b16 %v679, %v678
    %v788 = vpack.c.b16 %v681, %v680
    %v789 = vpack.c.b16 %v683, %v682
    %v790 = vpack.c.b16 %v685, %v684
    %v791 = vpack.c.b16 %v687, %v686
    %v792 = vpack.c.b16 %v689, %v688
    %v793 = vpack.c.b16 %v691, %v690
    %v794 = vpack.c.b16 %v693, %v692
    %v795 = vpack.c.b16 %v695, %v694
    %v796 = vpack.c.b16 %v697, %v696
    %v797 = vpack.c.b16 %v699, %v698
    %v798 = vpack.c.b16 %v701, %v700
    %v799 = vpack.c.b16 %v703, %v702
    %v800 = vpack.c.b16 %v705, %v704
    %v801 = vpack.c.b16 %v707, %v706
    %v802 = vpack.c.b16 %v709, %v708
    %v803 = vpack.c.b16 %v711, %v710
    %v804 = vpack.c.b16 %v713, %v712
    %v805 = vpack.c.b16 %v715, %v714
    %vm896 = vcmask 261120
    %v898 = vsel %vm896, %v168, 0
    %900 = vmatprep.subr.bf16.mxu0 0
    %901 = vmatpush1.bf16.msra.mxu0 %v716
    %902 = vmatprep.subr.bf16.mxu0 0
    %903 = vmatpush1.bf16.msra.mxu0 %v717
    %904 = vmatprep.subr.bf16.mxu0 0
    %905 = vmatpush1.bf16.msra.mxu0 %v718
    %906 = vmatprep.subr.bf16.mxu0 0
    %907 = vmatpush1.bf16.msra.mxu0 %v719
    %908 = vmatprep.subr.bf16.mxu0 0
    %909 = vmatpush1.bf16.msra.mxu0 %v720
    %910 = vmatprep.subr.bf16.mxu0 0
    %911 = vmatpush1.bf16.msra.mxu0 %v721
    %912 = vmatprep.subr.bf16.mxu0 0
    %913 = vmatpush1.bf16.msra.mxu0 %v722
    %914 = vmatprep.subr.bf16.mxu0 0
    %915 = vmatpush1.bf16.msra.mxu0 %v723
    %916 = vmatprep.subr.bf16.mxu0 0
    %917 = vmatpush1.bf16.msra.mxu0 %v724
    %918 = vmatprep.subr.bf16.mxu0 0
    %919 = vmatpush1.bf16.msra.mxu0 %v725
    %920 = vmatprep.subr.bf16.mxu0 0
    %921 = vmatpush1.bf16.msra.mxu0 %v726
    %922 = vmatprep.subr.bf16.mxu0 0
    %923 = vmatpush1.bf16.msra.mxu0 %v727
    %924 = vmatprep.subr.bf16.mxu0 0
    %925 = vmatpush1.bf16.msra.mxu0 %v728
    %926 = vmatprep.subr.bf16.mxu0 0
    %927 = vmatpush1.bf16.msra.mxu0 %v729
    %928 = vmatprep.subr.bf16.mxu0 0
    %929 = vmatpush1.bf16.msra.mxu0 %v730
    %930 = vmatprep.subr.bf16.mxu0 0
    %931 = vmatpush1.bf16.msra.mxu0 %v731
    %932 = vmatprep.mubr.bf16.mxu0 %v158
    %933 = vmatmul.mubr.bf16.gmra.mrb[0].mxu0 %v157
    %v934 = vpop.f32.mrb[0].mxu0
    %v935 = vadd.f32 %v354, %v934
    %v936 = vpop.f32.mrb[0].mxu0
    %v937 = vpop.f32.mrb[0].mxu0
    %v938 = vpop.f32.mrb[0].mxu0
    %939 = vdwg.mxu0
    %940 = vmatprep.subr.bf16.mxu0 0
    %941 = vmatpush1.bf16.msra.mxu0 %v732
    %942 = vmatprep.subr.bf16.mxu0 0
    %943 = vmatpush1.bf16.msra.mxu0 %v733
    %944 = vmatprep.subr.bf16.mxu0 0
    %945 = vmatpush1.bf16.msra.mxu0 %v734
    %946 = vmatprep.subr.bf16.mxu0 0
    %947 = vmatpush1.bf16.msra.mxu0 %v735
    %948 = vmatprep.subr.bf16.mxu0 0
    %949 = vmatpush1.bf16.msra.mxu0 %v736
    %950 = vmatprep.subr.bf16.mxu0 0
    %951 = vmatpush1.bf16.msra.mxu0 %v737
    %952 = vmatprep.subr.bf16.mxu0 0
    %953 = vmatpush1.bf16.msra.mxu0 %v738
    %954 = vmatprep.subr.bf16.mxu0 0
    %955 = vmatpush1.bf16.msra.mxu0 %v739
    %956 = vmatprep.subr.bf16.mxu0 0
    %957 = vmatpush1.bf16.msra.mxu0 %v740
    %958 = vmatprep.subr.bf16.mxu0 0
    %959 = vmatpush1.bf16.msra.mxu0 %v741
    %960 = vmatprep.subr.bf16.mxu0 0
    %961 = vmatpush1.bf16.msra.mxu0 %v742
    %962 = vmatprep.subr.bf16.mxu0 0
    %963 = vmatpush1.bf16.msra.mxu0 %v743
    %964 = vmatprep.subr.bf16.mxu0 0
    %965 = vmatpush1.bf16.msra.mxu0 %v744
    %966 = vmatprep.subr.bf16.mxu0 0
    %967 = vmatpush1.bf16.msra.mxu0 %v745
    %968 = vmatprep.subr.bf16.mxu0 0
    %969 = vmatpush1.bf16.msra.mxu0 %v746
    %970 = vmatprep.subr.bf16.mxu0 0
    %971 = vmatpush1.bf16.msra.mxu0 %v747
    %972 = vmatprep.mubr.bf16.mxu0 %v160
    %973 = vmatmul.mubr.bf16.gmra.mrb[0].mxu0 %v159
    %v974 = vpop.f32.mrb[0].mxu0
    %v975 = vadd.f32 %v935, %v974
    %v976 = vpop.f32.mrb[0].mxu0
    %v977 = vpop.f32.mrb[0].mxu0
    %v978 = vpop.f32.mrb[0].mxu0
    %979 = vdwg.mxu0
    %980 = vmatprep.subr.bf16.mxu0 0
    %981 = vmatpush1.bf16.msra.mxu0 %v748
    %982 = vmatprep.subr.bf16.mxu0 0
    %983 = vmatpush1.bf16.msra.mxu0 %v749
    %984 = vmatprep.subr.bf16.mxu0 0
    %985 = vmatpush1.bf16.msra.mxu0 %v750
    %986 = vmatprep.subr.bf16.mxu0 0
    %987 = vmatpush1.bf16.msra.mxu0 %v751
    %988 = vmatprep.subr.bf16.mxu0 0
    %989 = vmatpush1.bf16.msra.mxu0 %v752
    %990 = vmatprep.subr.bf16.mxu0 0
    %991 = vmatpush1.bf16.msra.mxu0 %v753
    %992 = vmatprep.subr.bf16.mxu0 0
    %993 = vmatpush1.bf16.msra.mxu0 %v754
    %994 = vmatprep.subr.bf16.mxu0 0
    %995 = vmatpush1.bf16.msra.mxu0 %v755
    %996 = vmatprep.subr.bf16.mxu0 0
    %997 = vmatpush1.bf16.msra.mxu0 %v756
    %998 = vmatprep.subr.bf16.mxu0 0
    %999 = vmatpush1.bf16.msra.mxu0 %v757
    %1000 = vmatprep.subr.bf16.mxu0 0
    %1001 = vmatpush1.bf16.msra.mxu0 %v758
    %1002 = vmatprep.subr.bf16.mxu0 0
    %1003 = vmatpush1.bf16.msra.mxu0 %v759
    %1004 = vmatprep.subr.bf16.mxu0 0
    %1005 = vmatpush1.bf16.msra.mxu0 %v760
    %1006 = vmatprep.subr.bf16.mxu0 0
    %1007 = vmatpush1.bf16.msra.mxu0 %v761
    %1008 = vmatprep.subr.bf16.mxu0 0
    %1009 = vmatpush1.bf16.msra.mxu0 %v762
    %1010 = vmatprep.subr.bf16.mxu0 0
    %1011 = vmatpush1.bf16.msra.mxu0 %v763
    %1012 = vmatprep.mubr.bf16.mxu0 %v162
    %1013 = vmatmul.mubr.bf16.gmra.mrb[0].mxu0 %v161
    %v1014 = vpop.f32.mrb[0].mxu0
    %v1015 = vadd.f32 %v975, %v1014
    %v1016 = vpop.f32.mrb[0].mxu0
    %v1017 = vpop.f32.mrb[0].mxu0
    %v1018 = vpop.f32.mrb[0].mxu0
    %1019 = vdwg.mxu0
    %1020 = vmatprep.subr.bf16.mxu0 0
    %1021 = vmatpush1.bf16.msra.mxu0 %v764
    %1022 = vmatprep.subr.bf16.mxu0 0
    %1023 = vmatpush1.bf16.msra.mxu0 %v765
    %1024 = vmatprep.subr.bf16.mxu0 0
    %1025 = vmatpush1.bf16.msra.mxu0 %v766
    %1026 = vmatprep.subr.bf16.mxu0 0
    %1027 = vmatpush1.bf16.msra.mxu0 %v767
    %1028 = vmatprep.subr.bf16.mxu0 0
    %1029 = vmatpush1.bf16.msra.mxu0 %v768
    %1030 = vmatprep.subr.bf16.mxu0 0
    %1031 = vmatpush1.bf16.msra.mxu0 %v769
    %1032 = vmatprep.subr.bf16.mxu0 0
    %1033 = vmatpush1.bf16.msra.mxu0 %v770
    %1034 = vmatprep.subr.bf16.mxu0 0
    %1035 = vmatpush1.bf16.msra.mxu0 %v771
    %1036 = vmatprep.subr.bf16.mxu0 0
    %1037 = vmatpush1.bf16.msra.mxu0 %v772
    %1038 = vmatprep.subr.bf16.mxu0 0
    %1039 = vmatpush1.bf16.msra.mxu0 %v773
    %1040 = vmatprep.subr.bf16.mxu0 0
    %1041 = vmatpush1.bf16.msra.mxu0 %v774
    %1042 = vmatprep.subr.bf16.mxu0 0
    %1043 = vmatpush1.bf16.msra.mxu0 %v775
    %1044 = vmatprep.subr.bf16.mxu0 0
    %1045 = vmatpush1.bf16.msra.mxu0 %v776
    %1046 = vmatprep.subr.bf16.mxu0 0
    %1047 = vmatpush1.bf16.msra.mxu0 %v777
    %1048 = vmatprep.subr.bf16.mxu0 0
    %1049 = vmatpush1.bf16.msra.mxu0 %v778
    %1050 = vmatprep.subr.bf16.mxu0 0
    %1051 = vmatpush1.bf16.msra.mxu0 %v779
    %1052 = vmatprep.mubr.bf16.mxu0 %v164
    %1053 = vmatmul.mubr.bf16.gmra.mrb[0].mxu0 %v163
    %v1054 = vpop.f32.mrb[0].mxu0
    %v1055 = vadd.f32 %v1015, %v1054
    %v1056 = vpop.f32.mrb[0].mxu0
    %v1057 = vpop.f32.mrb[0].mxu0
    %v1058 = vpop.f32.mrb[0].mxu0
    %1059 = vdwg.mxu0
    %1060 = vmatprep.subr.bf16.mxu0 0
    %1061 = vmatpush1.bf16.msra.mxu0 %v780
    %1062 = vmatprep.subr.bf16.mxu0 0
    %1063 = vmatpush1.bf16.msra.mxu0 %v781
    %1064 = vmatprep.subr.bf16.mxu0 0
    %1065 = vmatpush1.bf16.msra.mxu0 %v782
    %1066 = vmatprep.subr.bf16.mxu0 0
    %1067 = vmatpush1.bf16.msra.mxu0 %v783
    %1068 = vmatprep.subr.bf16.mxu0 0
    %1069 = vmatpush1.bf16.msra.mxu0 %v784
    %1070 = vmatprep.subr.bf16.mxu0 0
    %1071 = vmatpush1.bf16.msra.mxu0 %v785
    %1072 = vmatprep.subr.bf16.mxu0 0
    %1073 = vmatpush1.bf16.msra.mxu0 %v786
    %1074 = vmatprep.subr.bf16.mxu0 0
    %1075 = vmatpush1.bf16.msra.mxu0 %v787
    %1076 = vmatprep.subr.bf16.mxu0 0
    %1077 = vmatpush1.bf16.msra.mxu0 %v788
    %1078 = vmatprep.subr.bf16.mxu0 0
    %1079 = vmatpush1.bf16.msra.mxu0 %v789
    %1080 = vmatprep.subr.bf16.mxu0 0
    %1081 = vmatpush1.bf16.msra.mxu0 %v790
    %1082 = vmatprep.subr.bf16.mxu0 0
    %1083 = vmatpush1.bf16.msra.mxu0 %v791
    %1084 = vmatprep.subr.bf16.mxu0 0
    %1085 = vmatpush1.bf16.msra.mxu0 %v792
    %1086 = vmatprep.subr.bf16.mxu0 0
    %1087 = vmatpush1.bf16.msra.mxu0 %v793
    %1088 = vmatprep.subr.bf16.mxu0 0
    %1089 = vmatpush1.bf16.msra.mxu0 %v794
    %1090 = vmatprep.subr.bf16.mxu0 0
    %1091 = vmatpush1.bf16.msra.mxu0 %v795
    %1092 = vmatprep.mubr.bf16.mxu0 %v166
    %1093 = vmatmul.mubr.bf16.gmra.mrb[0].mxu0 %v165
    %v1094 = vpop.f32.mrb[0].mxu0
    %v1095 = vadd.f32 %v1055, %v1094
    %v1096 = vpop.f32.mrb[0].mxu0
    %v1097 = vpop.f32.mrb[0].mxu0
    %v1098 = vpop.f32.mrb[0].mxu0
    %1099 = vdwg.mxu0
    %1100 = vmatprep.subr.bf16.mxu0 0
    %1101 = vmatpush1.bf16.msra.mxu0 %v796
    %1102 = vmatprep.subr.bf16.mxu0 0
    %1103 = vmatpush1.bf16.msra.mxu0 %v797
    %1104 = vmatprep.subr.bf16.mxu0 0
    %1105 = vmatpush1.bf16.msra.mxu0 %v798
    %1106 = vmatprep.subr.bf16.mxu0 0
    %1107 = vmatpush1.bf16.msra.mxu0 %v799
    %1108 = vmatprep.subr.bf16.mxu0 0
    %1109 = vmatpush1.bf16.msra.mxu0 %v800
    %1110 = vmatprep.subr.bf16.mxu0 0
    %1111 = vmatpush1.bf16.msra.mxu0 %v801
    %1112 = vmatprep.subr.bf16.mxu0 0
    %1113 = vmatpush1.bf16.msra.mxu0 %v802
    %1114 = vmatprep.subr.bf16.mxu0 0
    %1115 = vmatpush1.bf16.msra.mxu0 %v803
    %1116 = vmatprep.subr.bf16.mxu0 0
    %1117 = vmatpush1.bf16.msra.mxu0 %v804
    %1118 = vmatprep.subr.bf16.mxu0 0
    %1119 = vmatpush1.bf16.msra.mxu0 %v805
    %1120 = vmatprep.subr.bf16.mxu0 0
    %1121 = vmatpush1.bf16.msra.mxu0 0
    %1122 = vmatprep.subr.bf16.mxu0 0
    %1123 = vmatpush1.bf16.msra.mxu0 0
    %1124 = vmatprep.subr.bf16.mxu0 0
    %1125 = vmatpush1.bf16.msra.mxu0 0
    %1126 = vmatprep.subr.bf16.mxu0 0
    %1127 = vmatpush1.bf16.msra.mxu0 0
    %1128 = vmatprep.subr.bf16.mxu0 0
    %1129 = vmatpush1.bf16.msra.mxu0 0
    %1130 = vmatprep.subr.bf16.mxu0 0
    %1131 = vmatpush1.bf16.msra.mxu0 0
    %1132 = vmatprep.mubr.bf16.mxu0 %v898
    %1133 = vmatmul.mubr.bf16.gmra.mrb[0].mxu0 %v167
    %v1134 = vpop.f32.mrb[0].mxu0
    %v1135 = vadd.f32 %v1095, %v1134
    %v1136 = vpop.f32.mrb[0].mxu0
    %v1137 = vpop.f32.mrb[0].mxu0
    %v1138 = vpop.f32.mrb[0].mxu0
    %1139 = vdwg.mxu0
    %v1140 = vld [vmem:[%s2] sm:$0xff]
    %v1141 = vld [vmem:[%s2 + $0x8] sm:$0xff]
    %v1142 = vld [vmem:[%s2 + $0x10] sm:$0xff]
    %v1143 = vld [vmem:[%s2 + $0x18] sm:$0xff]
    %v1145 = vsel %vm896, 0.0, 0
    %1147 = vmatprep.subr.mxu0 0.0
    %1148 = vmatpush1.msra.mxu0 %v1140
    %1149 = vmatprep.subr.mxu0 0.0
    %1150 = vmatpush1.msra.mxu0 %v1141
    %1151 = vmatprep.subr.mxu0 0.0
    %1152 = vmatpush1.msra.mxu0 %v1142
    %1153 = vmatprep.subr.mxu0 0.0
    %1154 = vmatpush1.msra.mxu0 %v1143
    %1155 = vmatprep.subr.mxu0 0.0
    %1156 = vmatpush1.msra.mxu0 0.0
    %1157 = vmatprep.subr.mxu0 0.0
    %1158 = vmatpush1.msra.mxu0 0.0
    %1159 = vmatprep.subr.mxu0 0.0
    %1160 = vmatpush1.msra.mxu0 0.0
    %1161 = vmatprep.subr.mxu0 0.0
    %1162 = vmatpush1.msra.mxu0 0.0
    %1163 = vmatprep.subr.mxu0 0.0
    %1164 = vmatpush1.msra.mxu0 0.0
    %1165 = vmatprep.subr.mxu0 0.0
    %1166 = vmatpush1.msra.mxu0 0.0
    %1167 = vmatprep.subr.mxu0 0.0
    %1168 = vmatpush1.msra.mxu0 0.0
    %1169 = vmatprep.subr.mxu0 0.0
    %1170 = vmatpush1.msra.mxu0 0.0
    %1171 = vmatprep.subr.mxu0 0.0
    %1172 = vmatpush1.msra.mxu0 0.0
    %1173 = vmatprep.subr.mxu0 0.0
    %1174 = vmatpush1.msra.mxu0 0.0
    %1175 = vmatprep.subr.mxu0 0.0
    %1176 = vmatpush1.msra.mxu0 0.0
    %1177 = vmatprep.subr.mxu0 0.0
    %1178 = vmatpush1.msra.mxu0 0.0
    %1179 = vmatprep.subr.mxu0 0.0
    %1180 = vmatpush1.msra.mxu0 0.0
    %1181 = vmatprep.subr.mxu0 0.0
    %1182 = vmatpush1.msra.mxu0 0.0
    %1183 = vmatprep.subr.mxu0 0.0
    %1184 = vmatpush1.msra.mxu0 0.0
    %1185 = vmatprep.subr.mxu0 0.0
    %1186 = vmatpush1.msra.mxu0 0.0
    %1187 = vmatprep.subr.mxu0 0.0
    %1188 = vmatpush1.msra.mxu0 0.0
    %1189 = vmatprep.subr.mxu0 0.0
    %1190 = vmatpush1.msra.mxu0 0.0
    %1191 = vmatprep.subr.mxu0 0.0
    %1192 = vmatpush1.msra.mxu0 0.0
    %1193 = vmatprep.subr.mxu0 0.0
    %1194 = vmatpush1.msra.mxu0 0.0
    %1195 = vmatprep.subr.mxu0 0.0
    %1196 = vmatpush1.msra.mxu0 0.0
    %1197 = vmatprep.subr.mxu0 0.0
    %1198 = vmatpush1.msra.mxu0 0.0
    %1199 = vmatprep.subr.mxu0 0.0
    %1200 = vmatpush1.msra.mxu0 0.0
    %1201 = vmatprep.subr.mxu0 0.0
    %1202 = vmatpush1.msra.mxu0 0.0
    %1203 = vmatprep.subr.mxu0 0.0
    %1204 = vmatpush1.msra.mxu0 0.0
    %1205 = vmatprep.subr.mxu0 0.0
    %1206 = vmatpush1.msra.mxu0 0.0
    %1207 = vmatprep.subr.mxu0 0.0
    %1208 = vmatpush1.msra.mxu0 0.0
    %1209 = vmatprep.subr.mxu0 0.0
    %1210 = vmatpush1.msra.mxu0 0.0
    %1211 = vmatprep.mubr.f32.mxu0 0.0
    %1212 = vmatmul.mubr.f32.gmra.mrb[0].mxu0 %v1145
    %v1213 = vpop.f32.mrb[0].mxu0
    %v1214 = vadd.f32 0.0, %v1213
    %v1215 = vpop.f32.mrb[0].mxu0
    %1216 = vdwg.mxu0
    %v1217 = vadd.f32 %v1135, %v1214
    %v1218 = vxor.u32 %v1217, 2147483648
    %v1219 = vmul.f32 %v1218, 1.442695
    %v1220 = vpow.pop %v1219
    %v1221 = vadd.f32 %v1220, 1.0
    %v1222 = vrcp.pop %v1221
    %v1223 = vmul.f32 1.0, %v1222
    %v1224 = vtanh.pop %v1217
    %v1225 = vmul.f32 %v1223, 0.0
    %1227 = vrot.lane.b32.xlu0 %v1224, 64
    %v1228 = vpop.permute.xlu0 %1227
    %v1230 = vmul.f32 %v1223, %v1228
    %1232 = vrot.lane.b32.xlu0 %v1230, 32
    %v1233 = vpop.permute.xlu0 %1232
    %v1235 = vadd.f32 %v1225, %v1233
    %v1236 = vtanh.pop %v1235
    %1238 = vrot.lane.b32.xlu0 %v1236, 64
    %v1239 = vpop.permute.xlu0 %1238
    %v1241 = vmul.f32 %v1223, %v1239
    %1243 = vrot.lane.b32.xlu0 %v1241, 32
    %v1244 = vpop.permute.xlu0 %1243
    %vm1246 = vcmask 253952
    %1247 = vst.msk [vmem:[#allocation2] sm:$0x1] %vm1246, %v1244
    %v1248 = vsel %vm896, %v1244, 0
    %1250 = vmatprep.subr.mxu0 0.0
    %1251 = vmatpush1.msra.mxu0 %v1140
    %1252 = vmatprep.subr.mxu0 0.0
    %1253 = vmatpush1.msra.mxu0 %v1141
    %1254 = vmatprep.subr.mxu0 0.0
    %1255 = vmatpush1.msra.mxu0 %v1142
    %1256 = vmatprep.subr.mxu0 0.0
    %1257 = vmatpush1.msra.mxu0 %v1143
    %1258 = vmatprep.subr.mxu0 0.0
    %1259 = vmatpush1.msra.mxu0 0.0
    %1260 = vmatprep.subr.mxu0 0.0
    %1261 = vmatpush1.msra.mxu0 0.0
    %1262 = vmatprep.subr.mxu0 0.0
    %1263 = vmatpush1.msra.mxu0 0.0
    %1264 = vmatprep.subr.mxu0 0.0
    %1265 = vmatpush1.msra.mxu0 0.0
    %1266 = vmatprep.subr.mxu0 0.0
    %1267 = vmatpush1.msra.mxu0 0.0
    %1268 = vmatprep.subr.mxu0 0.0
    %1269 = vmatpush1.msra.mxu0 0.0
    %1270 = vmatprep.subr.mxu0 0.0
    %1271 = vmatpush1.msra.mxu0 0.0
    %1272 = vmatprep.subr.mxu0 0.0
    %1273 = vmatpush1.msra.mxu0 0.0
    %1274 = vmatprep.subr.mxu0 0.0
    %1275 = vmatpush1.msra.mxu0 0.0
    %1276 = vmatprep.subr.mxu0 0.0
    %1277 = vmatpush1.msra.mxu0 0.0
    %1278 = vmatprep.subr.mxu0 0.0
    %1279 = vmatpush1.msra.mxu0 0.0
    %1280 = vmatprep.subr.mxu0 0.0
    %1281 = vmatpush1.msra.mxu0 0.0
    %1282 = vmatprep.subr.mxu0 0.0
    %1283 = vmatpush1.msra.mxu0 0.0
    %1284 = vmatprep.subr.mxu0 0.0
    %1285 = vmatpush1.msra.mxu0 0.0
    %1286 = vmatprep.subr.mxu0 0.0
    %1287 = vmatpush1.msra.mxu0 0.0
    %1288 = vmatprep.subr.mxu0 0.0
    %1289 = vmatpush1.msra.mxu0 0.0
    %1290 = vmatprep.subr.mxu0 0.0
    %1291 = vmatpush1.msra.mxu0 0.0
    %1292 = vmatprep.subr.mxu0 0.0
    %1293 = vmatpush1.msra.mxu0 0.0
    %1294 = vmatprep.subr.mxu0 0.0
    %1295 = vmatpush1.msra.mxu0 0.0
    %1296 = vmatprep.subr.mxu0 0.0
    %1297 = vmatpush1.msra.mxu0 0.0
    %1298 = vmatprep.subr.mxu0 0.0
    %1299 = vmatpush1.msra.mxu0 0.0
    %1300 = vmatprep.subr.mxu0 0.0
    %1301 = vmatpush1.msra.mxu0 0.0
    %1302 = vmatprep.subr.mxu0 0.0
    %1303 = vmatpush1.msra.mxu0 0.0
    %1304 = vmatprep.subr.mxu0 0.0
    %1305 = vmatpush1.msra.mxu0 0.0
    %1306 = vmatprep.subr.mxu0 0.0
    %1307 = vmatpush1.msra.mxu0 0.0
    %1308 = vmatprep.subr.mxu0 0.0
    %1309 = vmatpush1.msra.mxu0 0.0
    %1310 = vmatprep.subr.mxu0 0.0
    %1311 = vmatpush1.msra.mxu0 0.0
    %1312 = vmatprep.subr.mxu0 0.0
    %1313 = vmatpush1.msra.mxu0 0.0
    %1314 = vmatprep.mubr.f32.mxu0 0.0
    %1315 = vmatmul.mubr.f32.gmra.mrb[0].mxu0 %v1248
    %v1316 = vpop.f32.mrb[0].mxu0
    %v1317 = vadd.f32 0.0, %v1316
    %v1318 = vpop.f32.mrb[0].mxu0
    %1319 = vdwg.mxu0
    %v1321 = vrot.slane %v1317, 7
    %v1323 = vadd.f32 %v1135, %v1321
    %v1324 = vxor.u32 %v1323, 2147483648
    %v1325 = vmul.f32 %v1324, 1.442695
    %v1326 = vpow.pop %v1325
    %v1327 = vadd.f32 %v1326, 1.0
    %v1328 = vrcp.pop %v1327
    %v1329 = vmul.f32 1.0, %v1328
    %v1330 = vtanh.pop %v1323
    %v1332 = vrot.slane %v1235, 7
    %v1334 = vmul.f32 %v1329, %v1332
    %1336 = vrot.lane.b32.xlu0 %v1330, 64
    %v1337 = vpop.permute.xlu0 %1336
    %v1339 = vmul.f32 %v1329, %v1337
    %1341 = vrot.lane.b32.xlu0 %v1339, 32
    %v1342 = vpop.permute.xlu0 %1341
    %v1344 = vadd.f32 %v1334, %v1342
    %v1345 = vtanh.pop %v1344
    %1347 = vrot.lane.b32.xlu0 %v1345, 64
    %v1348 = vpop.permute.xlu0 %1347
    %v1350 = vmul.f32 %v1329, %v1348
    %1352 = vrot.lane.b32.xlu0 %v1350, 32
    %v1353 = vpop.permute.xlu0 %1352
    %vm1355 = vcmask 254977
    %1356 = vst.msk [vmem:[#allocation2] sm:$0x2] %vm1355, %v1353
    %v1357 = vrot.slane %v1350, 1
    %1358 = vrot.lane.b32.xlu0 %v1357, 32
    %v1359 = vpop.permute.xlu0 %1358
    %v1360 = vsel %vm896, %v1359, 0
    %1362 = vmatprep.subr.mxu0 0.0
    %1363 = vmatpush1.msra.mxu0 %v1140
    %1364 = vmatprep.subr.mxu0 0.0
    %1365 = vmatpush1.msra.mxu0 %v1141
    %1366 = vmatprep.subr.mxu0 0.0
    %1367 = vmatpush1.msra.mxu0 %v1142
    %1368 = vmatprep.subr.mxu0 0.0
    %1369 = vmatpush1.msra.mxu0 %v1143
    %1370 = vmatprep.subr.mxu0 0.0
    %1371 = vmatpush1.msra.mxu0 0.0
    %1372 = vmatprep.subr.mxu0 0.0
    %1373 = vmatpush1.msra.mxu0 0.0
    %1374 = vmatprep.subr.mxu0 0.0
    %1375 = vmatpush1.msra.mxu0 0.0
    %1376 = vmatprep.subr.mxu0 0.0
    %1377 = vmatpush1.msra.mxu0 0.0
    %1378 = vmatprep.subr.mxu0 0.0
    %1379 = vmatpush1.msra.mxu0 0.0
    %1380 = vmatprep.subr.mxu0 0.0
    %1381 = vmatpush1.msra.mxu0 0.0
    %1382 = vmatprep.subr.mxu0 0.0
    %1383 = vmatpush1.msra.mxu0 0.0
    %1384 = vmatprep.subr.mxu0 0.0
    %1385 = vmatpush1.msra.mxu0 0.0
    %1386 = vmatprep.subr.mxu0 0.0
    %1387 = vmatpush1.msra.mxu0 0.0
    %1388 = vmatprep.subr.mxu0 0.0
    %1389 = vmatpush1.msra.mxu0 0.0
    %1390 = vmatprep.subr.mxu0 0.0
    %1391 = vmatpush1.msra.mxu0 0.0
    %1392 = vmatprep.subr.mxu0 0.0
    %1393 = vmatpush1.msra.mxu0 0.0
    %1394 = vmatprep.subr.mxu0 0.0
    %1395 = vmatpush1.msra.mxu0 0.0
    %1396 = vmatprep.subr.mxu0 0.0
    %1397 = vmatpush1.msra.mxu0 0.0
    %1398 = vmatprep.subr.mxu0 0.0
    %1399 = vmatpush1.msra.mxu0 0.0
    %1400 = vmatprep.subr.mxu0 0.0
    %1401 = vmatpush1.msra.mxu0 0.0
    %1402 = vmatprep.subr.mxu0 0.0
    %1403 = vmatpush1.msra.mxu0 0.0
    %1404 = vmatprep.subr.mxu0 0.0
    %1405 = vmatpush1.msra.mxu0 0.0
    %1406 = vmatprep.subr.mxu0 0.0
    %1407 = vmatpush1.msra.mxu0 0.0
    %1408 = vmatprep.subr.mxu0 0.0
    %1409 = vmatpush1.msra.mxu0 0.0
    %1410 = vmatprep.subr.mxu0 0.0
    %1411 = vmatpush1.msra.mxu0 0.0
    %1412 = vmatprep.subr.mxu0 0.0
    %1413 = vmatpush1.msra.mxu0 0.0
    %1414 = vmatprep.subr.mxu0 0.0
    %1415 = vmatpush1.msra.mxu0 0.0
    %1416 = vmatprep.subr.mxu0 0.0
    %1417 = vmatpush1.msra.mxu0 0.0
    %1418 = vmatprep.subr.mxu0 0.0
    %1419 = vmatpush1.msra.mxu0 0.0
    %1420 = vmatprep.subr.mxu0 0.0
    %1421 = vmatpush1.msra.mxu0 0.0
    %1422 = vmatprep.subr.mxu0 0.0
    %1423 = vmatpush1.msra.mxu0 0.0
    %1424 = vmatprep.subr.mxu0 0.0
    %1425 = vmatpush1.msra.mxu0 0.0
    %1426 = vmatprep.mubr.f32.mxu0 0.0
    %1427 = vmatmul.mubr.f32.gmra.mrb[0].mxu0 %v1360
    %v1428 = vpop.f32.mrb[0].mxu0
    %v1429 = vadd.f32 0.0, %v1428
    %v1430 = vpop.f32.mrb[0].mxu0
    %1431 = vdwg.mxu0
    %v1433 = vrot.slane %v1429, 6
    %v1435 = vadd.f32 %v1135, %v1433
    %v1436 = vxor.u32 %v1435, 2147483648
    %v1437 = vmul.f32 %v1436, 1.442695
    %v1438 = vpow.pop %v1437
    %v1439 = vadd.f32 %v1438, 1.0
    %v1440 = vrcp.pop %v1439
    %v1441 = vmul.f32 1.0, %v1440
    %v1442 = vtanh.pop %v1435
    %v1444 = vrot.slane %v1344, 7
    %v1446 = vmul.f32 %v1441, %v1444
    %1448 = vrot.lane.b32.xlu0 %v1442, 64
    %v1449 = vpop.permute.xlu0 %1448
    %v1451 = vmul.f32 %v1441, %v1449
    %1453 = vrot.lane.b32.xlu0 %v1451, 32
    %v1454 = vpop.permute.xlu0 %1453
    %v1456 = vadd.f32 %v1446, %v1454
    %v1457 = vtanh.pop %v1456
    %1459 = vrot.lane.b32.xlu0 %v1457, 64
    %v1460 = vpop.permute.xlu0 %1459
    %v1462 = vmul.f32 %v1441, %v1460
    %1464 = vrot.lane.b32.xlu0 %v1462, 32
    %v1465 = vpop.permute.xlu0 %1464
    %vm1467 = vcmask 256002
    %1468 = vst.msk [vmem:[#allocation2] sm:$0x4] %vm1467, %v1465
    %v1469 = vrot.slane %v1462, 2
    %1470 = vrot.lane.b32.xlu0 %v1469, 32
    %v1471 = vpop.permute.xlu0 %1470
    %v1472 = vsel %vm896, %v1471, 0
    %1474 = vmatprep.subr.mxu0 0.0
    %1475 = vmatpush1.msra.mxu0 %v1140
    %1476 = vmatprep.subr.mxu0 0.0
    %1477 = vmatpush1.msra.mxu0 %v1141
    %1478 = vmatprep.subr.mxu0 0.0
    %1479 = vmatpush1.msra.mxu0 %v1142
    %1480 = vmatprep.subr.mxu0 0.0
    %1481 = vmatpush1.msra.mxu0 %v1143
    %1482 = vmatprep.subr.mxu0 0.0
    %1483 = vmatpush1.msra.mxu0 0.0
    %1484 = vmatprep.subr.mxu0 0.0
    %1485 = vmatpush1.msra.mxu0 0.0
    %1486 = vmatprep.subr.mxu0 0.0
    %1487 = vmatpush1.msra.mxu0 0.0
    %1488 = vmatprep.subr.mxu0 0.0
    %1489 = vmatpush1.msra.mxu0 0.0
    %1490 = vmatprep.subr.mxu0 0.0
    %1491 = vmatpush1.msra.mxu0 0.0
    %1492 = vmatprep.subr.mxu0 0.0
    %1493 = vmatpush1.msra.mxu0 0.0
    %1494 = vmatprep.subr.mxu0 0.0
    %1495 = vmatpush1.msra.mxu0 0.0
    %1496 = vmatprep.subr.mxu0 0.0
    %1497 = vmatpush1.msra.mxu0 0.0
    %1498 = vmatprep.subr.mxu0 0.0
    %1499 = vmatpush1.msra.mxu0 0.0
    %1500 = vmatprep.subr.mxu0 0.0
    %1501 = vmatpush1.msra.mxu0 0.0
    %1502 = vmatprep.subr.mxu0 0.0
    %1503 = vmatpush1.msra.mxu0 0.0
    %1504 = vmatprep.subr.mxu0 0.0
    %1505 = vmatpush1.msra.mxu0 0.0
    %1506 = vmatprep.subr.mxu0 0.0
    %1507 = vmatpush1.msra.mxu0 0.0
    %1508 = vmatprep.subr.mxu0 0.0
    %1509 = vmatpush1.msra.mxu0 0.0
    %1510 = vmatprep.subr.mxu0 0.0
    %1511 = vmatpush1.msra.mxu0 0.0
    %1512 = vmatprep.subr.mxu0 0.0
    %1513 = vmatpush1.msra.mxu0 0.0
    %1514 = vmatprep.subr.mxu0 0.0
    %1515 = vmatpush1.msra.mxu0 0.0
    %1516 = vmatprep.subr.mxu0 0.0
    %1517 = vmatpush1.msra.mxu0 0.0
    %1518 = vmatprep.subr.mxu0 0.0
    %1519 = vmatpush1.msra.mxu0 0.0
    %1520 = vmatprep.subr.mxu0 0.0
    %1521 = vmatpush1.msra.mxu0 0.0
    %1522 = vmatprep.subr.mxu0 0.0
    %1523 = vmatpush1.msra.mxu0 0.0
    %1524 = vmatprep.subr.mxu0 0.0
    %1525 = vmatpush1.msra.mxu0 0.0
    %1526 = vmatprep.subr.mxu0 0.0
    %1527 = vmatpush1.msra.mxu0 0.0
    %1528 = vmatprep.subr.mxu0 0.0
    %1529 = vmatpush1.msra.mxu0 0.0
    %1530 = vmatprep.subr.mxu0 0.0
    %1531 = vmatpush1.msra.mxu0 0.0
    %1532 = vmatprep.subr.mxu0 0.0
    %1533 = vmatpush1.msra.mxu0 0.0
    %1534 = vmatprep.subr.mxu0 0.0
    %1535 = vmatpush1.msra.mxu0 0.0
    %1536 = vmatprep.subr.mxu0 0.0
    %1537 = vmatpush1.msra.mxu0 0.0
    %1538 = vmatprep.mubr.f32.mxu0 0.0
    %1539 = vmatmul.mubr.f32.gmra.mrb[0].mxu0 %v1472
    %v1540 = vpop.f32.mrb[0].mxu0
    %v1541 = vadd.f32 0.0, %v1540
    %v1542 = vpop.f32.mrb[0].mxu0
    %1543 = vdwg.mxu0
    %v1545 = vrot.slane %v1541, 5
    %v1547 = vadd.f32 %v1135, %v1545
    %v1548 = vxor.u32 %v1547, 2147483648
    %v1549 = vmul.f32 %v1548, 1.442695
    %v1550 = vpow.pop %v1549
    %v1551 = vadd.f32 %v1550, 1.0
    %v1552 = vrcp.pop %v1551
    %v1553 = vmul.f32 1.0, %v1552
    %v1554 = vtanh.pop %v1547
    %v1556 = vrot.slane %v1456, 7
    %v1558 = vmul.f32 %v1553, %v1556
    %1560 = vrot.lane.b32.xlu0 %v1554, 64
    %v1561 = vpop.permute.xlu0 %1560
    %v1563 = vmul.f32 %v1553, %v1561
    %1565 = vrot.lane.b32.xlu0 %v1563, 32
    %v1566 = vpop.permute.xlu0 %1565
    %v1568 = vadd.f32 %v1558, %v1566
    %v1569 = vtanh.pop %v1568
    %1571 = vrot.lane.b32.xlu0 %v1569, 64
    %v1572 = vpop.permute.xlu0 %1571
    %v1574 = vmul.f32 %v1553, %v1572
    %1576 = vrot.lane.b32.xlu0 %v1574, 32
    %v1577 = vpop.permute.xlu0 %1576
    %vm1579 = vcmask 257027
    %1580 = vst.msk [vmem:[#allocation2] sm:$0x8] %vm1579, %v1577
    %v1581 = vrot.slane %v1574, 3
    %1582 = vrot.lane.b32.xlu0 %v1581, 32
    %v1583 = vpop.permute.xlu0 %1582
    %v1584 = vsel %vm896, %v1583, 0
    %1586 = vmatprep.subr.mxu0 0.0
    %1587 = vmatpush1.msra.mxu0 %v1140
    %1588 = vmatprep.subr.mxu0 0.0
    %1589 = vmatpush1.msra.mxu0 %v1141
    %1590 = vmatprep.subr.mxu0 0.0
    %1591 = vmatpush1.msra.mxu0 %v1142
    %1592 = vmatprep.subr.mxu0 0.0
    %1593 = vmatpush1.msra.mxu0 %v1143
    %1594 = vmatprep.subr.mxu0 0.0
    %1595 = vmatpush1.msra.mxu0 0.0
    %1596 = vmatprep.subr.mxu0 0.0
    %1597 = vmatpush1.msra.mxu0 0.0
    %1598 = vmatprep.subr.mxu0 0.0
    %1599 = vmatpush1.msra.mxu0 0.0
    %1600 = vmatprep.subr.mxu0 0.0
    %1601 = vmatpush1.msra.mxu0 0.0
    %1602 = vmatprep.subr.mxu0 0.0
    %1603 = vmatpush1.msra.mxu0 0.0
    %1604 = vmatprep.subr.mxu0 0.0
    %1605 = vmatpush1.msra.mxu0 0.0
    %1606 = vmatprep.subr.mxu0 0.0
    %1607 = vmatpush1.msra.mxu0 0.0
    %1608 = vmatprep.subr.mxu0 0.0
    %1609 = vmatpush1.msra.mxu0 0.0
    %1610 = vmatprep.subr.mxu0 0.0
    %1611 = vmatpush1.msra.mxu0 0.0
    %1612 = vmatprep.subr.mxu0 0.0
    %1613 = vmatpush1.msra.mxu0 0.0
    %1614 = vmatprep.subr.mxu0 0.0
    %1615 = vmatpush1.msra.mxu0 0.0
    %1616 = vmatprep.subr.mxu0 0.0
    %1617 = vmatpush1.msra.mxu0 0.0
    %1618 = vmatprep.subr.mxu0 0.0
    %1619 = vmatpush1.msra.mxu0 0.0
    %1620 = vmatprep.subr.mxu0 0.0
    %1621 = vmatpush1.msra.mxu0 0.0
    %1622 = vmatprep.subr.mxu0 0.0
    %1623 = vmatpush1.msra.mxu0 0.0
    %1624 = vmatprep.subr.mxu0 0.0
    %1625 = vmatpush1.msra.mxu0 0.0
    %1626 = vmatprep.subr.mxu0 0.0
    %1627 = vmatpush1.msra.mxu0 0.0
    %1628 = vmatprep.subr.mxu0 0.0
    %1629 = vmatpush1.msra.mxu0 0.0
    %1630 = vmatprep.subr.mxu0 0.0
    %1631 = vmatpush1.msra.mxu0 0.0
    %1632 = vmatprep.subr.mxu0 0.0
    %1633 = vmatpush1.msra.mxu0 0.0
    %1634 = vmatprep.subr.mxu0 0.0
    %1635 = vmatpush1.msra.mxu0 0.0
    %1636 = vmatprep.subr.mxu0 0.0
    %1637 = vmatpush1.msra.mxu0 0.0
    %1638 = vmatprep.subr.mxu0 0.0
    %1639 = vmatpush1.msra.mxu0 0.0
    %1640 = vmatprep.subr.mxu0 0.0
    %1641 = vmatpush1.msra.mxu0 0.0
    %1642 = vmatprep.subr.mxu0 0.0
    %1643 = vmatpush1.msra.mxu0 0.0
    %1644 = vmatprep.subr.mxu0 0.0
    %1645 = vmatpush1.msra.mxu0 0.0
    %1646 = vmatprep.subr.mxu0 0.0
    %1647 = vmatpush1.msra.mxu0 0.0
    %1648 = vmatprep.subr.mxu0 0.0
    %1649 = vmatpush1.msra.mxu0 0.0
    %1650 = vmatprep.mubr.f32.mxu0 0.0
    %1651 = vmatmul.mubr.f32.gmra.mrb[0].mxu0 %v1584
    %v1652 = vpop.f32.mrb[0].mxu0
    %v1653 = vadd.f32 0.0, %v1652
    %v1654 = vpop.f32.mrb[0].mxu0
    %1655 = vdwg.mxu0
    %v1657 = vrot.slane %v1653, 4
    %v1659 = vadd.f32 %v1135, %v1657
    %v1660 = vxor.u32 %v1659, 2147483648
    %v1661 = vmul.f32 %v1660, 1.442695
    %v1662 = vpow.pop %v1661
    %v1663 = vadd.f32 %v1662, 1.0
    %v1664 = vrcp.pop %v1663
    %v1665 = vmul.f32 1.0, %v1664
    %v1666 = vtanh.pop %v1659
    %v1668 = vrot.slane %v1568, 7
    %v1670 = vmul.f32 %v1665, %v1668
    %1672 = vrot.lane.b32.xlu0 %v1666, 64
    %v1673 = vpop.permute.xlu0 %1672
    %v1675 = vmul.f32 %v1665, %v1673
    %1677 = vrot.lane.b32.xlu0 %v1675, 32
    %v1678 = vpop.permute.xlu0 %1677
    %v1680 = vadd.f32 %v1670, %v1678
    %v1681 = vtanh.pop %v1680
    %1683 = vrot.lane.b32.xlu0 %v1681, 64
    %v1684 = vpop.permute.xlu0 %1683
    %v1686 = vmul.f32 %v1665, %v1684
    %1688 = vrot.lane.b32.xlu0 %v1686, 32
    %v1689 = vpop.permute.xlu0 %1688
    %vm1691 = vcmask 258052
    %1692 = vst.msk [vmem:[#allocation2] sm:$0x10] %vm1691, %v1689
    %v1693 = vrot.slane %v1686, 4
    %1694 = vrot.lane.b32.xlu0 %v1693, 32
    %v1695 = vpop.permute.xlu0 %1694
    %v1696 = vsel %vm896, %v1695, 0
    %1698 = vmatprep.subr.mxu0 0.0
    %1699 = vmatpush1.msra.mxu0 %v1140
    %1700 = vmatprep.subr.mxu0 0.0
    %1701 = vmatpush1.msra.mxu0 %v1141
    %1702 = vmatprep.subr.mxu0 0.0
    %1703 = vmatpush1.msra.mxu0 %v1142
    %1704 = vmatprep.subr.mxu0 0.0
    %1705 = vmatpush1.msra.mxu0 %v1143
    %1706 = vmatprep.subr.mxu0 0.0
    %1707 = vmatpush1.msra.mxu0 0.0
    %1708 = vmatprep.subr.mxu0 0.0
    %1709 = vmatpush1.msra.mxu0 0.0
    %1710 = vmatprep.subr.mxu0 0.0
    %1711 = vmatpush1.msra.mxu0 0.0
    %1712 = vmatprep.subr.mxu0 0.0
    %1713 = vmatpush1.msra.mxu0 0.0
    %1714 = vmatprep.subr.mxu0 0.0
    %1715 = vmatpush1.msra.mxu0 0.0
    %1716 = vmatprep.subr.mxu0 0.0
    %1717 = vmatpush1.msra.mxu0 0.0
    %1718 = vmatprep.subr.mxu0 0.0
    %1719 = vmatpush1.msra.mxu0 0.0
    %1720 = vmatprep.subr.mxu0 0.0
    %1721 = vmatpush1.msra.mxu0 0.0
    %1722 = vmatprep.subr.mxu0 0.0
    %1723 = vmatpush1.msra.mxu0 0.0
    %1724 = vmatprep.subr.mxu0 0.0
    %1725 = vmatpush1.msra.mxu0 0.0
    %1726 = vmatprep.subr.mxu0 0.0
    %1727 = vmatpush1.msra.mxu0 0.0
    %1728 = vmatprep.subr.mxu0 0.0
    %1729 = vmatpush1.msra.mxu0 0.0
    %1730 = vmatprep.subr.mxu0 0.0
    %1731 = vmatpush1.msra.mxu0 0.0
    %1732 = vmatprep.subr.mxu0 0.0
    %1733 = vmatpush1.msra.mxu0 0.0
    %1734 = vmatprep.subr.mxu0 0.0
    %1735 = vmatpush1.msra.mxu0 0.0
    %1736 = vmatprep.subr.mxu0 0.0
    %1737 = vmatpush1.msra.mxu0 0.0
    %1738 = vmatprep.subr.mxu0 0.0
    %1739 = vmatpush1.msra.mxu0 0.0
    %1740 = vmatprep.subr.mxu0 0.0
    %1741 = vmatpush1.msra.mxu0 0.0
    %1742 = vmatprep.subr.mxu0 0.0
    %1743 = vmatpush1.msra.mxu0 0.0
    %1744 = vmatprep.subr.mxu0 0.0
    %1745 = vmatpush1.msra.mxu0 0.0
    %1746 = vmatprep.subr.mxu0 0.0
    %1747 = vmatpush1.msra.mxu0 0.0
    %1748 = vmatprep.subr.mxu0 0.0
    %1749 = vmatpush1.msra.mxu0 0.0
    %1750 = vmatprep.subr.mxu0 0.0
    %1751 = vmatpush1.msra.mxu0 0.0
    %1752 = vmatprep.subr.mxu0 0.0
    %1753 = vmatpush1.msra.mxu0 0.0
    %1754 = vmatprep.subr.mxu0 0.0
    %1755 = vmatpush1.msra.mxu0 0.0
    %1756 = vmatprep.subr.mxu0 0.0
    %1757 = vmatpush1.msra.mxu0 0.0
    %1758 = vmatprep.subr.mxu0 0.0
    %1759 = vmatpush1.msra.mxu0 0.0
    %1760 = vmatprep.subr.mxu0 0.0
    %1761 = vmatpush1.msra.mxu0 0.0
    %1762 = vmatprep.mubr.f32.mxu0 0.0
    %1763 = vmatmul.mubr.f32.gmra.mrb[0].mxu0 %v1696
    %v1764 = vpop.f32.mrb[0].mxu0
    %v1765 = vadd.f32 0.0, %v1764
    %v1766 = vpop.f32.mrb[0].mxu0
    %1767 = vdwg.mxu0
    %v1769 = vrot.slane %v1765, 3
    %v1771 = vadd.f32 %v1135, %v1769
    %v1772 = vxor.u32 %v1771, 2147483648
    %v1773 = vmul.f32 %v1772, 1.442695
    %v1774 = vpow.pop %v1773
    %v1775 = vadd.f32 %v1774, 1.0
    %v1776 = vrcp.pop %v1775
    %v1777 = vmul.f32 1.0, %v1776
    %v1778 = vtanh.pop %v1771
    %v1780 = vrot.slane %v1680, 7
    %v1782 = vmul.f32 %v1777, %v1780
    %1784 = vrot.lane.b32.xlu0 %v1778, 64
    %v1785 = vpop.permute.xlu0 %1784
    %v1787 = vmul.f32 %v1777, %v1785
    %1789 = vrot.lane.b32.xlu0 %v1787, 32
    %v1790 = vpop.permute.xlu0 %1789
    %v1792 = vadd.f32 %v1782, %v1790
    %v1793 = vtanh.pop %v1792
    %1795 = vrot.lane.b32.xlu0 %v1793, 64
    %v1796 = vpop.permute.xlu0 %1795
    %v1798 = vmul.f32 %v1777, %v1796
    %1800 = vrot.lane.b32.xlu0 %v1798, 32
    %v1801 = vpop.permute.xlu0 %1800
    %vm1803 = vcmask 259077
    %1804 = vst.msk [vmem:[#allocation2] sm:$0x20] %vm1803, %v1801
    %v1805 = vrot.slane %v1798, 5
    %1806 = vrot.lane.b32.xlu0 %v1805, 32
    %v1807 = vpop.permute.xlu0 %1806
    %v1808 = vsel %vm896, %v1807, 0
    %1810 = vmatprep.subr.mxu0 0.0
    %1811 = vmatpush1.msra.mxu0 %v1140
    %1812 = vmatprep.subr.mxu0 0.0
    %1813 = vmatpush1.msra.mxu0 %v1141
    %1814 = vmatprep.subr.mxu0 0.0
    %1815 = vmatpush1.msra.mxu0 %v1142
    %1816 = vmatprep.subr.mxu0 0.0
    %1817 = vmatpush1.msra.mxu0 %v1143
    %1818 = vmatprep.subr.mxu0 0.0
    %1819 = vmatpush1.msra.mxu0 0.0
    %1820 = vmatprep.subr.mxu0 0.0
    %1821 = vmatpush1.msra.mxu0 0.0
    %1822 = vmatprep.subr.mxu0 0.0
    %1823 = vmatpush1.msra.mxu0 0.0
    %1824 = vmatprep.subr.mxu0 0.0
    %1825 = vmatpush1.msra.mxu0 0.0
    %1826 = vmatprep.subr.mxu0 0.0
    %1827 = vmatpush1.msra.mxu0 0.0
    %1828 = vmatprep.subr.mxu0 0.0
    %1829 = vmatpush1.msra.mxu0 0.0
    %1830 = vmatprep.subr.mxu0 0.0
    %1831 = vmatpush1.msra.mxu0 0.0
    %1832 = vmatprep.subr.mxu0 0.0
    %1833 = vmatpush1.msra.mxu0 0.0
    %1834 = vmatprep.subr.mxu0 0.0
    %1835 = vmatpush1.msra.mxu0 0.0
    %1836 = vmatprep.subr.mxu0 0.0
    %1837 = vmatpush1.msra.mxu0 0.0
    %1838 = vmatprep.subr.mxu0 0.0
    %1839 = vmatpush1.msra.mxu0 0.0
    %1840 = vmatprep.subr.mxu0 0.0
    %1841 = vmatpush1.msra.mxu0 0.0
    %1842 = vmatprep.subr.mxu0 0.0
    %1843 = vmatpush1.msra.mxu0 0.0
    %1844 = vmatprep.subr.mxu0 0.0
    %1845 = vmatpush1.msra.mxu0 0.0
    %1846 = vmatprep.subr.mxu0 0.0
    %1847 = vmatpush1.msra.mxu0 0.0
    %1848 = vmatprep.subr.mxu0 0.0
    %1849 = vmatpush1.msra.mxu0 0.0
    %1850 = vmatprep.subr.mxu0 0.0
    %1851 = vmatpush1.msra.mxu0 0.0
    %1852 = vmatprep.subr.mxu0 0.0
    %1853 = vmatpush1.msra.mxu0 0.0
    %1854 = vmatprep.subr.mxu0 0.0
    %1855 = vmatpush1.msra.mxu0 0.0
    %1856 = vmatprep.subr.mxu0 0.0
    %1857 = vmatpush1.msra.mxu0 0.0
    %1858 = vmatprep.subr.mxu0 0.0
    %1859 = vmatpush1.msra.mxu0 0.0
    %1860 = vmatprep.subr.mxu0 0.0
    %1861 = vmatpush1.msra.mxu0 0.0
    %1862 = vmatprep.subr.mxu0 0.0
    %1863 = vmatpush1.msra.mxu0 0.0
    %1864 = vmatprep.subr.mxu0 0.0
    %1865 = vmatpush1.msra.mxu0 0.0
    %1866 = vmatprep.subr.mxu0 0.0
    %1867 = vmatpush1.msra.mxu0 0.0
    %1868 = vmatprep.subr.mxu0 0.0
    %1869 = vmatpush1.msra.mxu0 0.0
    %1870 = vmatprep.subr.mxu0 0.0
    %1871 = vmatpush1.msra.mxu0 0.0
    %1872 = vmatprep.subr.mxu0 0.0
    %1873 = vmatpush1.msra.mxu0 0.0
    %1874 = vmatprep.mubr.f32.mxu0 0.0
    %1875 = vmatmul.mubr.f32.gmra.mrb[0].mxu0 %v1808
    %v1876 = vpop.f32.mrb[0].mxu0
    %v1877 = vadd.f32 0.0, %v1876
    %v1878 = vpop.f32.mrb[0].mxu0
    %1879 = vdwg.mxu0
    %v1881 = vrot.slane %v1877, 2
    %v1883 = vadd.f32 %v1135, %v1881
    %v1884 = vxor.u32 %v1883, 2147483648
    %v1885 = vmul.f32 %v1884, 1.442695
    %v1886 = vpow.pop %v1885
    %v1887 = vadd.f32 %v1886, 1.0
    %v1888 = vrcp.pop %v1887
    %v1889 = vmul.f32 1.0, %v1888
    %v1890 = vtanh.pop %v1883
    %v1892 = vrot.slane %v1792, 7
    %v1894 = vmul.f32 %v1889, %v1892
    %1896 = vrot.lane.b32.xlu0 %v1890, 64
    %v1897 = vpop.permute.xlu0 %1896
    %v1899 = vmul.f32 %v1889, %v1897
    %1901 = vrot.lane.b32.xlu0 %v1899, 32
    %v1902 = vpop.permute.xlu0 %1901
    %v1904 = vadd.f32 %v1894, %v1902
    %v1905 = vtanh.pop %v1904
    %1907 = vrot.lane.b32.xlu0 %v1905, 64
    %v1908 = vpop.permute.xlu0 %1907
    %v1910 = vmul.f32 %v1889, %v1908
    %1912 = vrot.lane.b32.xlu0 %v1910, 32
    %v1913 = vpop.permute.xlu0 %1912
    %vm1915 = vcmask 260102
    %1916 = vst.msk [vmem:[#allocation2] sm:$0x40] %vm1915, %v1913
    %v1917 = vrot.slane %v1910, 6
    %1918 = vrot.lane.b32.xlu0 %v1917, 32
    %v1919 = vpop.permute.xlu0 %1918
    %v1920 = vsel %vm896, %v1919, 0
    %1922 = vmatprep.subr.mxu0 0.0
    %1923 = vmatpush1.msra.mxu0 %v1140
    %1924 = vmatprep.subr.mxu0 0.0
    %1925 = vmatpush1.msra.mxu0 %v1141
    %1926 = vmatprep.subr.mxu0 0.0
    %1927 = vmatpush1.msra.mxu0 %v1142
    %1928 = vmatprep.subr.mxu0 0.0
    %1929 = vmatpush1.msra.mxu0 %v1143
    %1930 = vmatprep.subr.mxu0 0.0
    %1931 = vmatpush1.msra.mxu0 0.0
    %1932 = vmatprep.subr.mxu0 0.0
    %1933 = vmatpush1.msra.mxu0 0.0
    %1934 = vmatprep.subr.mxu0 0.0
    %1935 = vmatpush1.msra.mxu0 0.0
    %1936 = vmatprep.subr.mxu0 0.0
    %1937 = vmatpush1.msra.mxu0 0.0
    %1938 = vmatprep.subr.mxu0 0.0
    %1939 = vmatpush1.msra.mxu0 0.0
    %1940 = vmatprep.subr.mxu0 0.0
    %1941 = vmatpush1.msra.mxu0 0.0
    %1942 = vmatprep.subr.mxu0 0.0
    %1943 = vmatpush1.msra.mxu0 0.0
    %1944 = vmatprep.subr.mxu0 0.0
    %1945 = vmatpush1.msra.mxu0 0.0
    %1946 = vmatprep.subr.mxu0 0.0
    %1947 = vmatpush1.msra.mxu0 0.0
    %1948 = vmatprep.subr.mxu0 0.0
    %1949 = vmatpush1.msra.mxu0 0.0
    %1950 = vmatprep.subr.mxu0 0.0
    %1951 = vmatpush1.msra.mxu0 0.0
    %1952 = vmatprep.subr.mxu0 0.0
    %1953 = vmatpush1.msra.mxu0 0.0
    %1954 = vmatprep.subr.mxu0 0.0
    %1955 = vmatpush1.msra.mxu0 0.0
    %1956 = vmatprep.subr.mxu0 0.0
    %1957 = vmatpush1.msra.mxu0 0.0
    %1958 = vmatprep.subr.mxu0 0.0
    %1959 = vmatpush1.msra.mxu0 0.0
    %1960 = vmatprep.subr.mxu0 0.0
    %1961 = vmatpush1.msra.mxu0 0.0
    %1962 = vmatprep.subr.mxu0 0.0
    %1963 = vmatpush1.msra.mxu0 0.0
    %1964 = vmatprep.subr.mxu0 0.0
    %1965 = vmatpush1.msra.mxu0 0.0
    %1966 = vmatprep.subr.mxu0 0.0
    %1967 = vmatpush1.msra.mxu0 0.0
    %1968 = vmatprep.subr.mxu0 0.0
    %1969 = vmatpush1.msra.mxu0 0.0
    %1970 = vmatprep.subr.mxu0 0.0
    %1971 = vmatpush1.msra.mxu0 0.0
    %1972 = vmatprep.subr.mxu0 0.0
    %1973 = vmatpush1.msra.mxu0 0.0
    %1974 = vmatprep.subr.mxu0 0.0
    %1975 = vmatpush1.msra.mxu0 0.0
    %1976 = vmatprep.subr.mxu0 0.0
    %1977 = vmatpush1.msra.mxu0 0.0
    %1978 = vmatprep.subr.mxu0 0.0
    %1979 = vmatpush1.msra.mxu0 0.0
    %1980 = vmatprep.subr.mxu0 0.0
    %1981 = vmatpush1.msra.mxu0 0.0
    %1982 = vmatprep.subr.mxu0 0.0
    %1983 = vmatpush1.msra.mxu0 0.0
    %1984 = vmatprep.subr.mxu0 0.0
    %1985 = vmatpush1.msra.mxu0 0.0
    %1986 = vmatprep.mubr.f32.mxu0 0.0
    %1987 = vmatmul.mubr.f32.gmra.mrb[0].mxu0 %v1920
    %v1988 = vpop.f32.mrb[0].mxu0
    %v1989 = vadd.f32 0.0, %v1988
    %v1990 = vpop.f32.mrb[0].mxu0
    %1991 = vdwg.mxu0
    %v1993 = vrot.slane %v1989, 1
    %v1995 = vadd.f32 %v1135, %v1993
    %v1996 = vxor.u32 %v1995, 2147483648
    %v1997 = vmul.f32 %v1996, 1.442695
    %v1998 = vpow.pop %v1997
    %v1999 = vadd.f32 %v1998, 1.0
    %v2000 = vrcp.pop %v1999
    %v2001 = vmul.f32 1.0, %v2000
    %v2002 = vtanh.pop %v1995
    %v2004 = vrot.slane %v1904, 7
    %v2006 = vmul.f32 %v2001, %v2004
    %2008 = vrot.lane.b32.xlu0 %v2002, 64
    %v2009 = vpop.permute.xlu0 %2008
    %v2011 = vmul.f32 %v2001, %v2009
    %2013 = vrot.lane.b32.xlu0 %v2011, 32
    %v2014 = vpop.permute.xlu0 %2013
    %v2016 = vadd.f32 %v2006, %v2014
    %v2017 = vtanh.pop %v2016
    %2019 = vrot.lane.b32.xlu0 %v2017, 64
    %v2020 = vpop.permute.xlu0 %2019
    %v2022 = vmul.f32 %v2001, %v2020
    %2024 = vrot.lane.b32.xlu0 %v2022, 32
    %v2025 = vpop.permute.xlu0 %2024
    %vm2027 = vcmask 261127
    %2028 = vst.msk [vmem:[#allocation2] sm:$0x80] %vm2027, %v2025
    %v2029 = vlaneseq
    %v2030 = vshrl.u32 %v2029, 7
    %v2031 = vsub.s32 7, %v2030
    %v2032 = vrot.slane %v2022, %v2031
    %2034 = vrot.lane.b32.xlu0 %v2032, 64
    %v2035 = vpop.permute.xlu0 %2034
    %vm2037 = vcmask 523520
    %2038 = vst.msk [vmem:[#allocation2] sm:$0xff] %vm2037, %v2035
    %v2039 = vld [vmem:[%s0 + $0x58] sm:$0xff]
    %2041 = vrot.lane.b32.xlu0 %v2039, 32
    %v2042 = vpop.permute.xlu0 %2041
    %vm2044 = vcmask 654848
    %2045 = vst.msk [vmem:[#allocation2] sm:$0xff] %vm2044, %v2042
    %v2046 = vld [vmem:[#allocation2] sm:$0xff]
    %v2047 = vpack.c.bf16 %v2046, %v2046
    %v2048 = vld [vmem:[%s4] sm:$0xf]
    %v2049 = vld [vmem:[%s4 + $0x4] sm:$0xf]
    %v2050 = vld [vmem:[%s4 + $0x8] sm:$0xf]
    %v2051 = vld [vmem:[%s4 + $0xc] sm:$0xf]
    %v2052 = vld [vmem:[%s4 + $0x10] sm:$0xf]
    %v2053 = vld [vmem:[%s4 + $0x14] sm:$0xf]
    %v2054 = vld [vmem:[%s4 + $0x18] sm:$0xf]
    %v2055 = vld [vmem:[%s4 + $0x1c] sm:$0xf]
    %v2056 = vld [vmem:[%s4 + $0x20] sm:$0xf]
    %v2057 = vld [vmem:[%s4 + $0x24] sm:$0xf]
    %v2058 = vld [vmem:[#allocation7] sm:$0x1]
    %v2060 = vlaneseq
    %v2061 = vshrl.u32 %v2060, 7
    %v2062 = vsub.s32 0, %v2061
    %v2063 = vrot.slane %v2058, %v2062
    %v2075 = vunpack.c.l.b16 %v2048
    %v2076 = vunpack.c.l.b16 %v2049
    %v2077 = vunpack.c.l.b16 %v2050
    %v2078 = vunpack.c.l.b16 %v2051
    %v2079 = vunpack.c.l.b16 %v2052
    %v2080 = vunpack.c.l.b16 %v2053
    %v2081 = vunpack.c.l.b16 %v2054
    %v2082 = vunpack.c.l.b16 %v2055
    %v2083 = vunpack.c.l.b16 %v2056
    %v2084 = vunpack.c.l.b16 %v2057
    %v2085 = vpack.c.b16 %v2076, %v2075
    %v2086 = vpack.c.b16 %v2078, %v2077
    %v2087 = vpack.c.b16 %v2080, %v2079
    %v2088 = vpack.c.b16 %v2082, %v2081
    %v2089 = vpack.c.b16 %v2084, %v2083
    %vm2095 = vcmask 654336
    %v2097 = vsel %vm2095, %v2047, 0
    %2099 = vmatprep.subr.bf16.mxu0 0
    %2100 = vmatpush1.bf16.msra.mxu0 %v2085
    %2101 = vmatprep.subr.bf16.mxu0 0
    %2102 = vmatpush1.bf16.msra.mxu0 %v2086
    %2103 = vmatprep.subr.bf16.mxu0 0
    %2104 = vmatpush1.bf16.msra.mxu0 %v2087
    %2105 = vmatprep.subr.bf16.mxu0 0
    %2106 = vmatpush1.bf16.msra.mxu0 %v2088
    %2107 = vmatprep.subr.bf16.mxu0 0
    %2108 = vmatpush1.bf16.msra.mxu0 %v2089
    %2109 = vmatprep.subr.bf16.mxu0 0
    %2110 = vmatpush1.bf16.msra.mxu0 0
    %2111 = vmatprep.subr.bf16.mxu0 0
    %2112 = vmatpush1.bf16.msra.mxu0 0
    %2113 = vmatprep.subr.bf16.mxu0 0
    %2114 = vmatpush1.bf16.msra.mxu0 0
    %2115 = vmatprep.subr.bf16.mxu0 0
    %2116 = vmatpush1.bf16.msra.mxu0 0
    %2117 = vmatprep.subr.bf16.mxu0 0
    %2118 = vmatpush1.bf16.msra.mxu0 0
    %2119 = vmatprep.subr.bf16.mxu0 0
    %2120 = vmatpush1.bf16.msra.mxu0 0
    %2121 = vmatprep.subr.bf16.mxu0 0
    %2122 = vmatpush1.bf16.msra.mxu0 0
    %2123 = vmatprep.subr.bf16.mxu0 0
    %2124 = vmatpush1.bf16.msra.mxu0 0
    %2125 = vmatprep.subr.bf16.mxu0 0
    %2126 = vmatpush1.bf16.msra.mxu0 0
    %2127 = vmatprep.subr.bf16.mxu0 0
    %2128 = vmatpush1.bf16.msra.mxu0 0
    %2129 = vmatprep.subr.bf16.mxu0 0
    %2130 = vmatpush1.bf16.msra.mxu0 0
    %2131 = vmatprep.mubr.bf16.mxu0 0
    %2132 = vmatmul.mubr.bf16.gmra.mrb[0].mxu0 %v2097
    %v2133 = vpop.f32.mrb[0].mxu0
    %v2134 = vadd.f32 %v2063, %v2133
    %v2135 = vpop.f32.mrb[0].mxu0
    %v2136 = vpop.f32.mrb[0].mxu0
    %v2137 = vpop.f32.mrb[0].mxu0
    %2138 = vdwg.mxu0
    %v2139 = vmax.f32 %v2134, 0.0
    %v2140 = vpack.c.bf16 %v2139, %v2139
    %v2141 = vld [vmem:[%s6] sm:$0xf]
    %v2142 = vld [vmem:[%s6 + $0x4] sm:$0xf]
    %v2143 = vld [vmem:[%s6 + $0x8] sm:$0xf]
    %v2144 = vld [vmem:[%s6 + $0xc] sm:$0xf]
    %v2145 = vld [vmem:[%s6 + $0x10] sm:$0xf]
    %v2146 = vld [vmem:[%s6 + $0x14] sm:$0xf]
    %v2147 = vld [vmem:[%s6 + $0x18] sm:$0xf]
    %v2148 = vld [vmem:[%s6 + $0x1c] sm:$0xf]
    %v2149 = vld [vmem:[#allocation8] sm:$0x1]
    %v2151 = vlaneseq
    %v2152 = vshrl.u32 %v2151, 7
    %v2153 = vsub.s32 0, %v2152
    %v2154 = vrot.slane %v2149, %v2153
    %v2164 = vunpack.c.l.b16 %v2141
    %v2165 = vunpack.c.l.b16 %v2142
    %v2166 = vunpack.c.l.b16 %v2143
    %v2167 = vunpack.c.l.b16 %v2144
    %v2168 = vunpack.c.l.b16 %v2145
    %v2169 = vunpack.c.l.b16 %v2146
    %v2170 = vunpack.c.l.b16 %v2147
    %v2171 = vunpack.c.l.b16 %v2148
    %v2172 = vpack.c.b16 %v2165, %v2164
    %v2173 = vpack.c.b16 %v2167, %v2166
    %v2174 = vpack.c.b16 %v2169, %v2168
    %v2175 = vpack.c.b16 %v2171, %v2170
    %vm2180 = vcmask 523264
    %v2182 = vsel %vm2180, %v2140, 0
    %2184 = vmatprep.subr.bf16.mxu0 0
    %2185 = vmatpush1.bf16.msra.mxu0 %v2172
    %2186 = vmatprep.subr.bf16.mxu0 0
    %2187 = vmatpush1.bf16.msra.mxu0 %v2173
    %2188 = vmatprep.subr.bf16.mxu0 0
    %2189 = vmatpush1.bf16.msra.mxu0 %v2174
    %2190 = vmatprep.subr.bf16.mxu0 0
    %2191 = vmatpush1.bf16.msra.mxu0 %v2175
    %2192 = vmatprep.subr.bf16.mxu0 0
    %2193 = vmatpush1.bf16.msra.mxu0 0
    %2194 = vmatprep.subr.bf16.mxu0 0
    %2195 = vmatpush1.bf16.msra.mxu0 0
    %2196 = vmatprep.subr.bf16.mxu0 0
    %2197 = vmatpush1.bf16.msra.mxu0 0
    %2198 = vmatprep.subr.bf16.mxu0 0
    %2199 = vmatpush1.bf16.msra.mxu0 0
    %2200 = vmatprep.subr.bf16.mxu0 0
    %2201 = vmatpush1.bf16.msra.mxu0 0
    %2202 = vmatprep.subr.bf16.mxu0 0
    %2203 = vmatpush1.bf16.msra.mxu0 0
    %2204 = vmatprep.subr.bf16.mxu0 0
    %2205 = vmatpush1.bf16.msra.mxu0 0
    %2206 = vmatprep.subr.bf16.mxu0 0
    %2207 = vmatpush1.bf16.msra.mxu0 0
    %2208 = vmatprep.subr.bf16.mxu0 0
    %2209 = vmatpush1.bf16.msra.mxu0 0
    %2210 = vmatprep.subr.bf16.mxu0 0
    %2211 = vmatpush1.bf16.msra.mxu0 0
    %2212 = vmatprep.subr.bf16.mxu0 0
    %2213 = vmatpush1.bf16.msra.mxu0 0
    %2214 = vmatprep.subr.bf16.mxu0 0
    %2215 = vmatpush1.bf16.msra.mxu0 0
    %2216 = vmatprep.mubr.bf16.mxu0 0
    %2217 = vmatmul.mubr.bf16.gmra.mrb[0].mxu0 %v2182
    %v2218 = vpop.f32.mrb[0].mxu0
    %v2219 = vadd.f32 %v2154, %v2218
    %v2220 = vpop.f32.mrb[0].mxu0
    %v2221 = vpop.f32.mrb[0].mxu0
    %v2222 = vpop.f32.mrb[0].mxu0
    %2223 = vdwg.mxu0
    %v2224 = vmax.f32 %v2219, 0.0
    %v2225 = vpack.c.bf16 %v2224, %v2224
    %v2226 = vld [vmem:[%s8] sm:$0xf]
    %v2227 = vld [vmem:[%s8 + $0x4] sm:$0xf]
    %v2228 = vld [vmem:[%s8 + $0x8] sm:$0xf]
    %v2229 = vld [vmem:[%s8 + $0xc] sm:$0xf]
    %v2230 = vld [vmem:[%s8 + $0x10] sm:$0xf]
    %v2231 = vld [vmem:[%s8 + $0x14] sm:$0xf]
    %v2232 = vld [vmem:[%s8 + $0x18] sm:$0xf]
    %v2233 = vld [vmem:[%s8 + $0x1c] sm:$0xf]
    %v2234 = vld [vmem:[#allocation10] sm:$0x1]
    %v2236 = vlaneseq
    %v2237 = vshrl.u32 %v2236, 7
    %v2238 = vsub.s32 0, %v2237
    %v2239 = vrot.slane %v2234, %v2238
    %v2249 = vunpack.c.l.b16 %v2226
    %v2250 = vunpack.c.l.b16 %v2227
    %v2251 = vunpack.c.l.b16 %v2228
    %v2252 = vunpack.c.l.b16 %v2229
    %v2253 = vunpack.c.l.b16 %v2230
    %v2254 = vunpack.c.l.b16 %v2231
    %v2255 = vunpack.c.l.b16 %v2232
    %v2256 = vunpack.c.l.b16 %v2233
    %v2257 = vpack.c.b16 %v2250, %v2249
    %v2258 = vpack.c.b16 %v2252, %v2251
    %v2259 = vpack.c.b16 %v2254, %v2253
    %v2260 = vpack.c.b16 %v2256, %v2255
    %v2266 = vsel %vm2180, %v2225, 0
    %2268 = vmatprep.subr.bf16.mxu0 0
    %2269 = vmatpush1.bf16.msra.mxu0 %v2257
    %2270 = vmatprep.subr.bf16.mxu0 0
    %2271 = vmatpush1.bf16.msra.mxu0 %v2258
    %2272 = vmatprep.subr.bf16.mxu0 0
    %2273 = vmatpush1.bf16.msra.mxu0 %v2259
    %2274 = vmatprep.subr.bf16.mxu0 0
    %2275 = vmatpush1.bf16.msra.mxu0 %v2260
    %2276 = vmatprep.subr.bf16.mxu0 0
    %2277 = vmatpush1.bf16.msra.mxu0 0
    %2278 = vmatprep.subr.bf16.mxu0 0
    %2279 = vmatpush1.bf16.msra.mxu0 0
    %2280 = vmatprep.subr.bf16.mxu0 0
    %2281 = vmatpush1.bf16.msra.mxu0 0
    %2282 = vmatprep.subr.bf16.mxu0 0
    %2283 = vmatpush1.bf16.msra.mxu0 0
    %2284 = vmatprep.subr.bf16.mxu0 0
    %2285 = vmatpush1.bf16.msra.mxu0 0
    %2286 = vmatprep.subr.bf16.mxu0 0
    %2287 = vmatpush1.bf16.msra.mxu0 0
    %2288 = vmatprep.subr.bf16.mxu0 0
    %2289 = vmatpush1.bf16.msra.mxu0 0
    %2290 = vmatprep.subr.bf16.mxu0 0
    %2291 = vmatpush1.bf16.msra.mxu0 0
    %2292 = vmatprep.subr.bf16.mxu0 0
    %2293 = vmatpush1.bf16.msra.mxu0 0
    %2294 = vmatprep.subr.bf16.mxu0 0
    %2295 = vmatpush1.bf16.msra.mxu0 0
    %2296 = vmatprep.subr.bf16.mxu0 0
    %2297 = vmatpush1.bf16.msra.mxu0 0
    %2298 = vmatprep.subr.bf16.mxu0 0
    %2299 = vmatpush1.bf16.msra.mxu0 0
    %2300 = vmatprep.mubr.bf16.mxu0 0
    %2301 = vmatmul.mubr.bf16.gmra.mrb[0].mxu0 %v2266
    %v2302 = vpop.f32.mrb[0].mxu0
    %v2303 = vadd.f32 %v2239, %v2302
    %v2304 = vpop.f32.mrb[0].mxu0
    %v2305 = vpop.f32.mrb[0].mxu0
    %v2306 = vpop.f32.mrb[0].mxu0
    %2307 = vdwg.mxu0
    %v2308 = vmax.f32 %v2303, 0.0
    %v2309 = vpack.c.bf16 %v2308, %v2308
    %v2310 = vld [vmem:[#allocation11] sm:$0xf]
    %v2311 = vld [vmem:[#allocation11 + $0x4] sm:$0xf]
    %v2312 = vld [vmem:[#allocation11 + $0x8] sm:$0xf]
    %v2313 = vld [vmem:[#allocation11 + $0xc] sm:$0xf]
    %v2314 = vld [vmem:[#allocation13] sm:$0x1]
    %v2316 = vlaneseq
    %v2317 = vshrl.u32 %v2316, 7
    %v2318 = vsub.s32 0, %v2317
    %v2319 = vrot.slane %v2314, %v2318
    %v2325 = vunpack.c.l.b16 %v2310
    %v2326 = vunpack.c.l.b16 %v2311
    %v2327 = vunpack.c.l.b16 %v2312
    %v2328 = vunpack.c.l.b16 %v2313
    %v2329 = vpack.c.b16 %v2326, %v2325
    %v2330 = vpack.c.b16 %v2328, %v2327
    %v2334 = vsel %vm896, %v2309, 0
    %2336 = vmatprep.subr.bf16.mxu0 0
    %2337 = vmatpush1.bf16.msra.mxu0 %v2329
    %2338 = vmatprep.subr.bf16.mxu0 0
    %2339 = vmatpush1.bf16.msra.mxu0 %v2330
    %2340 = vmatprep.subr.bf16.mxu0 0
    %2341 = vmatpush1.bf16.msra.mxu0 0
    %2342 = vmatprep.subr.bf16.mxu0 0
    %2343 = vmatpush1.bf16.msra.mxu0 0
    %2344 = vmatprep.subr.bf16.mxu0 0
    %2345 = vmatpush1.bf16.msra.mxu0 0
    %2346 = vmatprep.subr.bf16.mxu0 0
    %2347 = vmatpush1.bf16.msra.mxu0 0
    %2348 = vmatprep.subr.bf16.mxu0 0
    %2349 = vmatpush1.bf16.msra.mxu0 0
    %2350 = vmatprep.subr.bf16.mxu0 0
    %2351 = vmatpush1.bf16.msra.mxu0 0
    %2352 = vmatprep.subr.bf16.mxu0 0
    %2353 = vmatpush1.bf16.msra.mxu0 0
    %2354 = vmatprep.subr.bf16.mxu0 0
    %2355 = vmatpush1.bf16.msra.mxu0 0
    %2356 = vmatprep.subr.bf16.mxu0 0
    %2357 = vmatpush1.bf16.msra.mxu0 0
    %2358 = vmatprep.subr.bf16.mxu0 0
    %2359 = vmatpush1.bf16.msra.mxu0 0
    %2360 = vmatprep.subr.bf16.mxu0 0
    %2361 = vmatpush1.bf16.msra.mxu0 0
    %2362 = vmatprep.subr.bf16.mxu0 0
    %2363 = vmatpush1.bf16.msra.mxu0 0
    %2364 = vmatprep.subr.bf16.mxu0 0
    %2365 = vmatpush1.bf16.msra.mxu0 0
    %2366 = vmatprep.subr.bf16.mxu0 0
    %2367 = vmatpush1.bf16.msra.mxu0 0
    %2368 = vmatprep.mubr.bf16.mxu0 0
    %2369 = vmatmul.mubr.bf16.gmra.mrb[0].mxu0 %v2334
    %v2370 = vpop.f32.mrb[0].mxu0
    %v2371 = vadd.f32 %v2319, %v2370
    %v2372 = vpop.f32.mrb[0].mxu0
    %v2373 = vpop.f32.mrb[0].mxu0
    %v2374 = vpop.f32.mrb[0].mxu0
    %2375 = vdwg.mxu0
    %v2376 = vmax.f32 %v2371, 0.0
    %v2377 = vpack.c.bf16 %v2376, %v2376
    %v2378 = vld [vmem:[%s12] sm:$0xf]
    %v2379 = vld [vmem:[%s12 + $0x4] sm:$0xf]
    %v2380 = vld [vmem:[%s12 + $0x8] sm:$0xf]
    %v2381 = vld [vmem:[%s12 + $0xc] sm:$0xf]
    %v2382 = vld [vmem:[#allocation14] sm:$0x1]
    %v2384 = vlaneseq
    %v2385 = vshrl.u32 %v2384, 7
    %v2386 = vsub.s32 0, %v2385
    %v2387 = vrot.slane %v2382, %v2386
    %v2393 = vunpack.c.l.b16 %v2378
    %v2394 = vunpack.c.l.b16 %v2379
    %v2395 = vunpack.c.l.b16 %v2380
    %v2396 = vunpack.c.l.b16 %v2381
    %v2397 = vpack.c.b16 %v2394, %v2393
    %v2398 = vpack.c.b16 %v2396, %v2395
    %v2402 = vsel %vm896, %v2377, 0
    %2404 = vmatprep.subr.bf16.mxu0 0
    %2405 = vmatpush1.bf16.msra.mxu0 %v2397
    %2406 = vmatprep.subr.bf16.mxu0 0
    %2407 = vmatpush1.bf16.msra.mxu0 %v2398
    %2408 = vmatprep.subr.bf16.mxu0 0
    %2409 = vmatpush1.bf16.msra.mxu0 0
    %2410 = vmatprep.subr.bf16.mxu0 0
    %2411 = vmatpush1.bf16.msra.mxu0 0
    %2412 = vmatprep.subr.bf16.mxu0 0
    %2413 = vmatpush1.bf16.msra.mxu0 0
    %2414 = vmatprep.subr.bf16.mxu0 0
    %2415 = vmatpush1.bf16.msra.mxu0 0
    %2416 = vmatprep.subr.bf16.mxu0 0
    %2417 = vmatpush1.bf16.msra.mxu0 0
    %2418 = vmatprep.subr.bf16.mxu0 0
    %2419 = vmatpush1.bf16.msra.mxu0 0
    %2420 = vmatprep.subr.bf16.mxu0 0
    %2421 = vmatpush1.bf16.msra.mxu0 0
    %2422 = vmatprep.subr.bf16.mxu0 0
    %2423 = vmatpush1.bf16.msra.mxu0 0
    %2424 = vmatprep.subr.bf16.mxu0 0
    %2425 = vmatpush1.bf16.msra.mxu0 0
    %2426 = vmatprep.subr.bf16.mxu0 0
    %2427 = vmatpush1.bf16.msra.mxu0 0
    %2428 = vmatprep.subr.bf16.mxu0 0
    %2429 = vmatpush1.bf16.msra.mxu0 0
    %2430 = vmatprep.subr.bf16.mxu0 0
    %2431 = vmatpush1.bf16.msra.mxu0 0
    %2432 = vmatprep.subr.bf16.mxu0 0
    %2433 = vmatpush1.bf16.msra.mxu0 0
    %2434 = vmatprep.subr.bf16.mxu0 0
    %2435 = vmatpush1.bf16.msra.mxu0 0
    %2436 = vmatprep.mubr.bf16.mxu0 0
    %2437 = vmatmul.mubr.bf16.gmra.mrb[0].mxu0 %v2402
    %v2438 = vpop.f32.mrb[0].mxu0
    %v2439 = vadd.f32 %v2387, %v2438
    %v2440 = vpop.f32.mrb[0].mxu0
    %v2441 = vpop.f32.mrb[0].mxu0
    %v2442 = vpop.f32.mrb[0].mxu0
    %2443 = vdwg.mxu0
    %v2444 = vxor.u32 %v2439, 2147483648
    %v2445 = vmul.f32 %v2444, 1.442695
    %v2446 = vpow.pop %v2445
    %v2447 = vadd.f32 %v2446, 1.0
    %v2448 = vrcp.pop %v2447
    %v2449 = vmul.f32 1.0, %v2448
    %vm2450 = vcmask 31744
    %2451 = vst.msk [vmem:[%s14] sm:$0xff] %vm2450, %v2449
    // Predicated region
    $region90: #{lstm_hidden_forward.1} parent=1 // pred_check
      _
    $region91: #{lstm_hidden_forward.1} parent=1 // pred_check_branch
      %2453 = sbr.rel (0) target = $region93
    $region92: #{lstm_hidden_forward.1} parent=1 // pred_region
      _
    $region93: #{lstm_hidden_forward.1} parent=1 // pred_fallthru
      _
    // Predicated region
    $region94: #{lstm_hidden_forward.1} parent=1 // pred_check
      _
    $region95: #{lstm_hidden_forward.1} parent=1 // pred_check_branch
      %2455 = sbr.rel (0) target = $region97
    $region96: #{lstm_hidden_forward.1} parent=1 // pred_region
      _
    $region97: #{lstm_hidden_forward.1} parent=1 // pred_fallthru
      _
    %2456 = vsyncpa [#allocation4], 1
    %2457 = vsyncpa [#allocation6], 1
    %2458 = vsyncpa [#allocation9], 1
    %2459 = vsyncpa [#allocation12], 1
    %2460 = vsyncpa [#allocation15], 1

</llo_original>
